<compile_context>
chip_gen: v6e
topology: v6e:2x2x1
jax: 0.10.0
libtpu: 0.0.40
codegen_flags: <defaults>
</compile_context>

<pallas_src>
import jax
import jax.numpy as jnp
from jax.experimental import pallas as pl
from jax.experimental.pallas import tpu as pltpu


def _progressive_down_kernel(prog_ref, x_ref, q_ref, w_ref, b_ref, xo_ref, po_ref):
    # prog_ref: (Cin, TH, 2W)  super-rows (two source rows concatenated on lanes)
    # x_ref:    (Cout, TH, W2)
    # q_ref:    (W, W2)        half-size pooling matrix, entries in {0, 0.25}
    # w_ref:    (Cout, Cin)    SMEM scalars
    # b_ref:    (Cout,)        SMEM scalars
    # xo_ref:   (Cout, TH, W2)
    # po_ref:   (Cin, TH, W2)
    cin, th, two_w = prog_ref.shape
    w = two_w // 2
    cout, _, w2 = x_ref.shape

    # --- vertical (row-pair) sum on the VPU: lane-aligned halves ------------
    left = prog_ref[:, :, :w].astype(jnp.float32)       # rows 2i
    right = prog_ref[:, :, w:].astype(jnp.float32)      # rows 2i+1
    s = left + right                                     # (Cin, TH, W)

    # --- horizontal pair-average as ONE MXU lane contraction ----------------
    # TH % 8 == 0 (or TH == H2) -> collapsing leading dims is layout-free.
    pd = jnp.dot(s.reshape(cin * th, w), q_ref[...],
                 preferred_element_type=jnp.float32)     # (Cin*TH, W2)
    po_ref[...] = pd.reshape(cin, th, w2).astype(po_ref.dtype)

    # --- 1x1 conv on the VPU (small channel counts) + fused residual add ----
    # Re-read the pooled tile from the VMEM-resident output ref so Cin full
    # f32 tiles are not held live across the whole conv loop.
    for o in range(cout):
        acc = x_ref[o].astype(jnp.float32) + b_ref[o]
        for c in range(cin):
            acc = acc + w_ref[o, c] * po_ref[c].astype(jnp.float32)
        xo_ref[o] = acc.astype(xo_ref.dtype)


def _vmem_capacity_bytes():
    """Trace-time VMEM capacity query with a conservative (v7x-sized) fallback."""
    try:
        info = pltpu.get_tpu_info()
        cap = getattr(info, "vmem_capacity_bytes", None)
        if cap:
            return int(cap)
    except Exception:
        pass
    return 64 * 1024 * 1024


def progressive_down(x, prog, weight, bias):
    """x: (B, Cout, H/2, W/2) NCHW; prog: (B, Cin, H, W) NCHW.
    weight: (Cout, Cin, 1, 1); bias: (Cout,).
    Returns (x + conv1x1(down(prog)), down(prog)) in NCHW."""
    B, Cin, H, W = prog.shape
    Bx, Cout, H2x, W2x = x.shape
    assert H % 2 == 0 and W % 2 == 0, "naive 2x downsampler requires even H, W"
    H2, W2 = H // 2, W // 2
    assert (Bx, H2x, W2x) == (B, H2, W2)

    # Free reshape (no transpose): two source rows per output row -> one 2W lane row.
    prog_sr = prog.reshape(B, Cin, H2, 2 * W)

    # Half-size pooling matrix: pd[:, j] = 0.25 * (s[:, 2j] + s[:, 2j+1]).
    k = jnp.arange(W)
    j = jnp.arange(W2)
    q = jnp.where((k[:, None] // 2) == j[None, :], 0.25, 0.0).astype(jnp.float32)
    q_bytes = W * W2 * 4

    w2d = weight.reshape(Cout, Cin).astype(jnp.float32)
    b1d = bias.reshape(Cout).astype(jnp.float32)

    # --- per-generation VMEM budget -> row tile TH --------------------------
    vmem_cap = _vmem_capacity_bytes()
    vmem_limit = min(vmem_cap * 3 // 4, 96 * 1024 * 1024)   # ~96MiB v5e/v6e, ~48MiB v7x

    ip = prog.dtype.itemsize
    ix = x.dtype.itemsize
    # Double-buffered I/O blocks, per row of TH.
    io_row = 2 * (Cin * 2 * W * ip          # prog super-row block
                  + Cout * W2 * ix          # x block
                  + Cout * W2 * ix          # x-out block
                  + Cin * W2 * ip)          # prog-out block
    # In-kernel f32 temporaries per row (row-pair sum + pooled matmul result).
    tmp_row = 4 * (Cin * W + Cin * W2)
    row_bytes = io_row + tmp_row

    # Q buffers (grid-constant input, budget 2 buffers) + internal scratch margin.
    budget = vmem_limit - 2 * q_bytes - 4 * 1024 * 1024
    th_cap = max(8, budget // row_bytes)

    if H2 <= th_cap:
        TH = H2                              # full dim (need not be a multiple of 8)
    else:
        TH = max(8, (th_cap // 8) * 8)       # clamp to budget, sublane-aligned
    n_t = pl.cdiv(H2, TH)                    # padded last block if H2 % TH != 0

    smem_spec = pl.BlockSpec(memory_space=pltpu.MemorySpace.SMEM)

    cost = pl.CostEstimate(
        flops=(B * Cin * H2 * W                  # row-pair adds
               + 2 * B * Cin * H2 * W * W2       # dense-Q pooling matmul (K=W)
               + 2 * B * Cin * Cout * H2 * W2    # 1x1 conv MACs
               + 2 * B * Cout * H2 * W2),        # bias + residual add
        transcendentals=0,
        bytes_accessed=(prog_sr.size * ip
                        + x.size * ix
                        + B * Cout * H2 * W2 * ix
                        + B * Cin * H2 * W2 * ip
                        + q_bytes),
    )

    out_x, out_prog = pl.pallas_call(
        _progressive_down_kernel,
        out_shape=(
            jax.ShapeDtypeStruct((B, Cout, H2, W2), x.dtype),
            jax.ShapeDtypeStruct((B, Cin, H2, W2), prog.dtype),
        ),
        grid_spec=pltpu.PrefetchScalarGridSpec(
            num_scalar_prefetch=0,
            grid=(B, n_t),
            in_specs=[
                pl.BlockSpec((None, Cin, TH, 2 * W), lambda b, t: (b, 0, t, 0)),
                pl.BlockSpec((None, Cout, TH, W2), lambda b, t: (b, 0, t, 0)),
                pl.BlockSpec((W, W2), lambda b, t: (0, 0)),   # grid-constant Q
                smem_spec,   # weight (Cout, Cin) scalars
                smem_spec,   # bias (Cout,) scalars
            ],
            out_specs=[
                pl.BlockSpec((None, Cout, TH, W2), lambda b, t: (b, 0, t, 0)),
                pl.BlockSpec((None, Cin, TH, W2), lambda b, t: (b, 0, t, 0)),
            ],
        ),
        compiler_params=pltpu.CompilerParams(
            dimension_semantics=("parallel", "parallel"),
            vmem_limit_bytes=vmem_limit),
        cost_estimate=cost,
    )(prog_sr, x, q, w2d, b1d)

    # Outputs are already NCHW -- no reshapes/transposes needed.
    return out_x, out_prog


def _reference(x, prog, weight, bias):
    # Pure-JAX reference (NCHW): 2x2 avg pool + 1x1 conv + residual add.
    B, Cin, H, W = prog.shape
    pd = prog.reshape(B, Cin, H // 2, 2, W // 2, 2).mean(axis=(3, 5))
    w2d = weight.reshape(weight.shape[0], Cin)                   # (Cout, Cin)
    h = jnp.einsum('oc,bchw->bohw', w2d, pd,
                   precision=jax.lax.Precision.HIGHEST) + bias[None, :, None, None]
    return x + h, pd


if __name__ == "__main__":
    key = jax.random.PRNGKey(0)
    k1, k2, k3, k4 = jax.random.split(key, 4)

    B, Cin, Cout, H, W = 2, 4, 8, 16, 16
    prog = jax.random.normal(k1, (B, Cin, H, W), dtype=jnp.float32)
    x = jax.random.normal(k2, (B, Cout, H // 2, W // 2), dtype=jnp.float32)
    # Deterministic Conv2d(in=4, out=8, kernel_size=1) parameters.
    weight = jax.random.normal(k3, (Cout, Cin, 1, 1), dtype=jnp.float32) * 0.1
    bias = jax.random.normal(k4, (Cout,), dtype=jnp.float32) * 0.1

    fwd = jax.jit(progressive_down)
    out_x, out_prog = fwd(x, prog, weight, bias)
    jax.block_until_ready(out_x)
    jax.block_until_ready(out_prog)

    ref_x, ref_prog = _reference(x, prog, weight, bias)
    assert jnp.allclose(out_prog, ref_prog, atol=1e-5, rtol=1e-5), "prog downsample mismatch"
    assert jnp.allclose(out_x, ref_x, atol=1e-5, rtol=1e-5), "x + conv(down(prog)) mismatch"

    print("KERNEL_OK")
</pallas_src>

<mosaic_0001>
module attributes {stable_mosaic.version = 11 : i64} {
  func.func @_progressive_down_kernel(%arg0: i32, %arg1: i32, %arg2: memref<1x4x8x32xf32, #tpu.memory_space<vmem>>, %arg3: memref<1x8x8x8xf32, #tpu.memory_space<vmem>>, %arg4: memref<16x8xf32, #tpu.memory_space<vmem>>, %arg5: memref<8x4xf32, #tpu.memory_space<smem>>, %arg6: memref<8xf32, #tpu.memory_space<smem>>, %arg7: memref<1x8x8x8xf32, #tpu.memory_space<vmem>>, %arg8: memref<1x4x8x8xf32, #tpu.memory_space<vmem>>) attributes {dimension_semantics = [#tpu.dimension_semantics<parallel>, #tpu.dimension_semantics<parallel>], iteration_bounds = array<i64: 2, 1>, scalar_prefetch = 0 : i64, scratch_operands = 0 : i64, tpu.core_type = #tpu.core_type<tc>, window_params = [{transform_indices = @transform_0, window_bounds = array<i64: 1, 4, 8, 32>}, {transform_indices = @transform_1, window_bounds = array<i64: 1, 8, 8, 8>}, {pipeline_mode = #tpu.pipeline_mode<synchronous>, transform_indices = @transform_2, window_bounds = array<i64: 16, 8>}, {transform_indices = @transform_3, window_bounds = array<i64: 8, 4>}, {transform_indices = @transform_4, window_bounds = array<i64: 8>}, {transform_indices = @transform_5, window_bounds = array<i64: 1, 8, 8, 8>}, {transform_indices = @transform_6, window_bounds = array<i64: 1, 4, 8, 8>}]} {
    %c0 = arith.constant 0 : index
    %c0_0 = arith.constant 0 : index
    %c0_1 = arith.constant 0 : index
    %c0_2 = arith.constant 0 : index
    %0 = vector.load %arg2[%c0, %c0_0, %c0_1, %c0_2] : memref<1x4x8x32xf32, #tpu.memory_space<vmem>>, vector<1x4x8x16xf32>
    %1 = vector.shape_cast %0 : vector<1x4x8x16xf32> to vector<4x8x16xf32>
    %c0_3 = arith.constant 0 : index
    %c0_4 = arith.constant 0 : index
    %c0_5 = arith.constant 0 : index
    %c16 = arith.constant 16 : index
    %2 = vector.load %arg2[%c0_3, %c0_4, %c0_5, %c16] : memref<1x4x8x32xf32, #tpu.memory_space<vmem>>, vector<1x4x8x16xf32>
    %3 = vector.shape_cast %2 : vector<1x4x8x16xf32> to vector<4x8x16xf32>
    %4 = arith.addf %1, %3 : vector<4x8x16xf32>
    %5 = vector.shape_cast %4 : vector<4x8x16xf32> to vector<32x16xf32>
    %c0_6 = arith.constant 0 : index
    %c0_7 = arith.constant 0 : index
    %6 = vector.load %arg4[%c0_6, %c0_7] : memref<16x8xf32, #tpu.memory_space<vmem>>, vector<16x8xf32>
    %cst = arith.constant dense<0.000000e+00> : vector<32x8xf32>
    %7 = tpu.matmul %5, %6, %cst {dimension_numbers = #tpu.dot_dimension_numbers<[1], [0], [0], [1], [0, 0, 1, 1], [], []>} : vector<32x16xf32>, vector<16x8xf32>, vector<32x8xf32> -> vector<32x8xf32>
    %8 = vector.shape_cast %7 : vector<32x8xf32> to vector<4x8x8xf32>
    %c0_8 = arith.constant 0 : index
    %c0_9 = arith.constant 0 : index
    %c0_10 = arith.constant 0 : index
    %c0_11 = arith.constant 0 : index
    %9 = vector.load %arg8[%c0_8, %c0_9, %c0_10, %c0_11] : memref<1x4x8x8xf32, #tpu.memory_space<vmem>>, vector<1x4x8x8xf32>
    %10 = vector.shape_cast %9 : vector<1x4x8x8xf32> to vector<4x8x8xf32>
    %11 = vector.shape_cast %8 : vector<4x8x8xf32> to vector<1x4x8x8xf32>
    tpu.vector_store %arg8[%c0_8, %c0_9, %c0_10, %c0_11], %11 {strides = array<i32>} : memref<1x4x8x8xf32, #tpu.memory_space<vmem>>, vector<1x4x8x8xf32>,
    %c0_12 = arith.constant 0 : index
    %c0_13 = arith.constant 0 : index
    %c0_14 = arith.constant 0 : index
    %c0_15 = arith.constant 0 : index
    %12 = vector.load %arg3[%c0_12, %c0_13, %c0_14, %c0_15] : memref<1x8x8x8xf32, #tpu.memory_space<vmem>>, vector<1x1x8x8xf32>
    %13 = vector.shape_cast %12 : vector<1x1x8x8xf32> to vector<8x8xf32>
    %c0_16 = arith.constant 0 : index
    %14 = memref.load %arg6[%c0_16] : memref<8xf32, #tpu.memory_space<smem>>
    %15 = vector.broadcast %14 : f32 to vector<8x8xf32>
    %16 = arith.addf %13, %15 : vector<8x8xf32>
    %c0_17 = arith.constant 0 : index
    %c0_18 = arith.constant 0 : index
    %17 = memref.load %arg5[%c0_17, %c0_18] : memref<8x4xf32, #tpu.memory_space<smem>>
    %c0_19 = arith.constant 0 : index
    %c0_20 = arith.constant 0 : index
    %c0_21 = arith.constant 0 : index
    %c0_22 = arith.constant 0 : index
    %18 = vector.load %arg8[%c0_19, %c0_20, %c0_21, %c0_22] : memref<1x4x8x8xf32, #tpu.memory_space<vmem>>, vector<1x1x8x8xf32>
    %19 = vector.shape_cast %18 : vector<1x1x8x8xf32> to vector<8x8xf32>
    %20 = vector.broadcast %17 : f32 to vector<8x8xf32>
    %21 = arith.mulf %20, %19 : vector<8x8xf32>
    %22 = arith.addf %16, %21 : vector<8x8xf32>
    %c0_23 = arith.constant 0 : index
    %c1 = arith.constant 1 : index
    %23 = memref.load %arg5[%c0_23, %c1] : memref<8x4xf32, #tpu.memory_space<smem>>
    %c0_24 = arith.constant 0 : index
    %c1_25 = arith.constant 1 : index
    %c0_26 = arith.constant 0 : index
    %c0_27 = arith.constant 0 : index
    %24 = vector.load %arg8[%c0_24, %c1_25, %c0_26, %c0_27] : memref<1x4x8x8xf32, #tpu.memory_space<vmem>>, vector<1x1x8x8xf32>
    %25 = vector.shape_cast %24 : vector<1x1x8x8xf32> to vector<8x8xf32>
    %26 = vector.broadcast %23 : f32 to vector<8x8xf32>
    %27 = arith.mulf %26, %25 : vector<8x8xf32>
    %28 = arith.addf %22, %27 : vector<8x8xf32>
    %c0_28 = arith.constant 0 : index
    %c2 = arith.constant 2 : index
    %29 = memref.load %arg5[%c0_28, %c2] : memref<8x4xf32, #tpu.memory_space<smem>>
    %c0_29 = arith.constant 0 : index
    %c2_30 = arith.constant 2 : index
    %c0_31 = arith.constant 0 : index
    %c0_32 = arith.constant 0 : index
    %30 = vector.load %arg8[%c0_29, %c2_30, %c0_31, %c0_32] : memref<1x4x8x8xf32, #tpu.memory_space<vmem>>, vector<1x1x8x8xf32>
    %31 = vector.shape_cast %30 : vector<1x1x8x8xf32> to vector<8x8xf32>
    %32 = vector.broadcast %29 : f32 to vector<8x8xf32>
    %33 = arith.mulf %32, %31 : vector<8x8xf32>
    %34 = arith.addf %28, %33 : vector<8x8xf32>
    %c0_33 = arith.constant 0 : index
    %c3 = arith.constant 3 : index
    %35 = memref.load %arg5[%c0_33, %c3] : memref<8x4xf32, #tpu.memory_space<smem>>
    %c0_34 = arith.constant 0 : index
    %c3_35 = arith.constant 3 : index
    %c0_36 = arith.constant 0 : index
    %c0_37 = arith.constant 0 : index
    %36 = vector.load %arg8[%c0_34, %c3_35, %c0_36, %c0_37] : memref<1x4x8x8xf32, #tpu.memory_space<vmem>>, vector<1x1x8x8xf32>
    %37 = vector.shape_cast %36 : vector<1x1x8x8xf32> to vector<8x8xf32>
    %38 = vector.broadcast %35 : f32 to vector<8x8xf32>
    %39 = arith.mulf %38, %37 : vector<8x8xf32>
    %40 = arith.addf %34, %39 : vector<8x8xf32>
    %c0_38 = arith.constant 0 : index
    %c0_39 = arith.constant 0 : index
    %c0_40 = arith.constant 0 : index
    %c0_41 = arith.constant 0 : index
    %41 = vector.load %arg7[%c0_38, %c0_39, %c0_40, %c0_41] : memref<1x8x8x8xf32, #tpu.memory_space<vmem>>, vector<1x1x8x8xf32>
    %42 = vector.shape_cast %41 : vector<1x1x8x8xf32> to vector<8x8xf32>
    %43 = vector.shape_cast %40 : vector<8x8xf32> to vector<1x1x8x8xf32>
    tpu.vector_store %arg7[%c0_38, %c0_39, %c0_40, %c0_41], %43 {strides = array<i32>} : memref<1x8x8x8xf32, #tpu.memory_space<vmem>>, vector<1x1x8x8xf32>,
    %c0_42 = arith.constant 0 : index
    %c1_43 = arith.constant 1 : index
    %c0_44 = arith.constant 0 : index
    %c0_45 = arith.constant 0 : index
    %44 = vector.load %arg3[%c0_42, %c1_43, %c0_44, %c0_45] : memref<1x8x8x8xf32, #tpu.memory_space<vmem>>, vector<1x1x8x8xf32>
    %45 = vector.shape_cast %44 : vector<1x1x8x8xf32> to vector<8x8xf32>
    %c1_46 = arith.constant 1 : index
    %46 = memref.load %arg6[%c1_46] : memref<8xf32, #tpu.memory_space<smem>>
    %47 = vector.broadcast %46 : f32 to vector<8x8xf32>
    %48 = arith.addf %45, %47 : vector<8x8xf32>
    %c1_47 = arith.constant 1 : index
    %c0_48 = arith.constant 0 : index
    %49 = memref.load %arg5[%c1_47, %c0_48] : memref<8x4xf32, #tpu.memory_space<smem>>
    %c0_49 = arith.constant 0 : index
    %c0_50 = arith.constant 0 : index
    %c0_51 = arith.constant 0 : index
    %c0_52 = arith.constant 0 : index
    %50 = vector.load %arg8[%c0_49, %c0_50, %c0_51, %c0_52] : memref<1x4x8x8xf32, #tpu.memory_space<vmem>>, vector<1x1x8x8xf32>
    %51 = vector.shape_cast %50 : vector<1x1x8x8xf32> to vector<8x8xf32>
    %52 = vector.broadcast %49 : f32 to vector<8x8xf32>
    %53 = arith.mulf %52, %51 : vector<8x8xf32>
    %54 = arith.addf %48, %53 : vector<8x8xf32>
    %c1_53 = arith.constant 1 : index
    %c1_54 = arith.constant 1 : index
    %55 = memref.load %arg5[%c1_53, %c1_54] : memref<8x4xf32, #tpu.memory_space<smem>>
    %c0_55 = arith.constant 0 : index
    %c1_56 = arith.constant 1 : index
    %c0_57 = arith.constant 0 : index
    %c0_58 = arith.constant 0 : index
    %56 = vector.load %arg8[%c0_55, %c1_56, %c0_57, %c0_58] : memref<1x4x8x8xf32, #tpu.memory_space<vmem>>, vector<1x1x8x8xf32>
    %57 = vector.shape_cast %56 : vector<1x1x8x8xf32> to vector<8x8xf32>
    %58 = vector.broadcast %55 : f32 to vector<8x8xf32>
    %59 = arith.mulf %58, %57 : vector<8x8xf32>
    %60 = arith.addf %54, %59 : vector<8x8xf32>
    %c1_59 = arith.constant 1 : index
    %c2_60 = arith.constant 2 : index
    %61 = memref.load %arg5[%c1_59, %c2_60] : memref<8x4xf32, #tpu.memory_space<smem>>
    %c0_61 = arith.constant 0 : index
    %c2_62 = arith.constant 2 : index
    %c0_63 = arith.constant 0 : index
    %c0_64 = arith.constant 0 : index
    %62 = vector.load %arg8[%c0_61, %c2_62, %c0_63, %c0_64] : memref<1x4x8x8xf32, #tpu.memory_space<vmem>>, vector<1x1x8x8xf32>
    %63 = vector.shape_cast %62 : vector<1x1x8x8xf32> to vector<8x8xf32>
    %64 = vector.broadcast %61 : f32 to vector<8x8xf32>
    %65 = arith.mulf %64, %63 : vector<8x8xf32>
    %66 = arith.addf %60, %65 : vector<8x8xf32>
    %c1_65 = arith.constant 1 : index
    %c3_66 = arith.constant 3 : index
    %67 = memref.load %arg5[%c1_65, %c3_66] : memref<8x4xf32, #tpu.memory_space<smem>>
    %c0_67 = arith.constant 0 : index
    %c3_68 = arith.constant 3 : index
    %c0_69 = arith.constant 0 : index
    %c0_70 = arith.constant 0 : index
    %68 = vector.load %arg8[%c0_67, %c3_68, %c0_69, %c0_70] : memref<1x4x8x8xf32, #tpu.memory_space<vmem>>, vector<1x1x8x8xf32>
    %69 = vector.shape_cast %68 : vector<1x1x8x8xf32> to vector<8x8xf32>
    %70 = vector.broadcast %67 : f32 to vector<8x8xf32>
    %71 = arith.mulf %70, %69 : vector<8x8xf32>
    %72 = arith.addf %66, %71 : vector<8x8xf32>
    %c0_71 = arith.constant 0 : index
    %c1_72 = arith.constant 1 : index
    %c0_73 = arith.constant 0 : index
    %c0_74 = arith.constant 0 : index
    %73 = vector.load %arg7[%c0_71, %c1_72, %c0_73, %c0_74] : memref<1x8x8x8xf32, #tpu.memory_space<vmem>>, vector<1x1x8x8xf32>
    %74 = vector.shape_cast %73 : vector<1x1x8x8xf32> to vector<8x8xf32>
    %75 = vector.shape_cast %72 : vector<8x8xf32> to vector<1x1x8x8xf32>
    tpu.vector_store %arg7[%c0_71, %c1_72, %c0_73, %c0_74], %75 {strides = array<i32>} : memref<1x8x8x8xf32, #tpu.memory_space<vmem>>, vector<1x1x8x8xf32>,
    %c0_75 = arith.constant 0 : index
    %c2_76 = arith.constant 2 : index
    %c0_77 = arith.constant 0 : index
    %c0_78 = arith.constant 0 : index
    %76 = vector.load %arg3[%c0_75, %c2_76, %c0_77, %c0_78] : memref<1x8x8x8xf32, #tpu.memory_space<vmem>>, vector<1x1x8x8xf32>
    %77 = vector.shape_cast %76 : vector<1x1x8x8xf32> to vector<8x8xf32>
    %c2_79 = arith.constant 2 : index
    %78 = memref.load %arg6[%c2_79] : memref<8xf32, #tpu.memory_space<smem>>
    %79 = vector.broadcast %78 : f32 to vector<8x8xf32>
    %80 = arith.addf %77, %79 : vector<8x8xf32>
    %c2_80 = arith.constant 2 : index
    %c0_81 = arith.constant 0 : index
    %81 = memref.load %arg5[%c2_80, %c0_81] : memref<8x4xf32, #tpu.memory_space<smem>>
    %c0_82 = arith.constant 0 : index
    %c0_83 = arith.constant 0 : index
    %c0_84 = arith.constant 0 : index
    %c0_85 = arith.constant 0 : index
    %82 = vector.load %arg8[%c0_82, %c0_83, %c0_84, %c0_85] : memref<1x4x8x8xf32, #tpu.memory_space<vmem>>, vector<1x1x8x8xf32>
    %83 = vector.shape_cast %82 : vector<1x1x8x8xf32> to vector<8x8xf32>
    %84 = vector.broadcast %81 : f32 to vector<8x8xf32>
    %85 = arith.mulf %84, %83 : vector<8x8xf32>
    %86 = arith.addf %80, %85 : vector<8x8xf32>
    %c2_86 = arith.constant 2 : index
    %c1_87 = arith.constant 1 : index
    %87 = memref.load %arg5[%c2_86, %c1_87] : memref<8x4xf32, #tpu.memory_space<smem>>
    %c0_88 = arith.constant 0 : index
    %c1_89 = arith.constant 1 : index
    %c0_90 = arith.constant 0 : index
    %c0_91 = arith.constant 0 : index
    %88 = vector.load %arg8[%c0_88, %c1_89, %c0_90, %c0_91] : memref<1x4x8x8xf32, #tpu.memory_space<vmem>>, vector<1x1x8x8xf32>
    %89 = vector.shape_cast %88 : vector<1x1x8x8xf32> to vector<8x8xf32>
    %90 = vector.broadcast %87 : f32 to vector<8x8xf32>
    %91 = arith.mulf %90, %89 : vector<8x8xf32>
    %92 = arith.addf %86, %91 : vector<8x8xf32>
    %c2_92 = arith.constant 2 : index
    %c2_93 = arith.constant 2 : index
    %93 = memref.load %arg5[%c2_92, %c2_93] : memref<8x4xf32, #tpu.memory_space<smem>>
    %c0_94 = arith.constant 0 : index
    %c2_95 = arith.constant 2 : index
    %c0_96 = arith.constant 0 : index
    %c0_97 = arith.constant 0 : index
    %94 = vector.load %arg8[%c0_94, %c2_95, %c0_96, %c0_97] : memref<1x4x8x8xf32, #tpu.memory_space<vmem>>, vector<1x1x8x8xf32>
    %95 = vector.shape_cast %94 : vector<1x1x8x8xf32> to vector<8x8xf32>
    %96 = vector.broadcast %93 : f32 to vector<8x8xf32>
    %97 = arith.mulf %96, %95 : vector<8x8xf32>
    %98 = arith.addf %92, %97 : vector<8x8xf32>
    %c2_98 = arith.constant 2 : index
    %c3_99 = arith.constant 3 : index
    %99 = memref.load %arg5[%c2_98, %c3_99] : memref<8x4xf32, #tpu.memory_space<smem>>
    %c0_100 = arith.constant 0 : index
    %c3_101 = arith.constant 3 : index
    %c0_102 = arith.constant 0 : index
    %c0_103 = arith.constant 0 : index
    %100 = vector.load %arg8[%c0_100, %c3_101, %c0_102, %c0_103] : memref<1x4x8x8xf32, #tpu.memory_space<vmem>>, vector<1x1x8x8xf32>
    %101 = vector.shape_cast %100 : vector<1x1x8x8xf32> to vector<8x8xf32>
    %102 = vector.broadcast %99 : f32 to vector<8x8xf32>
    %103 = arith.mulf %102, %101 : vector<8x8xf32>
    %104 = arith.addf %98, %103 : vector<8x8xf32>
    %c0_104 = arith.constant 0 : index
    %c2_105 = arith.constant 2 : index
    %c0_106 = arith.constant 0 : index
    %c0_107 = arith.constant 0 : index
    %105 = vector.load %arg7[%c0_104, %c2_105, %c0_106, %c0_107] : memref<1x8x8x8xf32, #tpu.memory_space<vmem>>, vector<1x1x8x8xf32>
    %106 = vector.shape_cast %105 : vector<1x1x8x8xf32> to vector<8x8xf32>
    %107 = vector.shape_cast %104 : vector<8x8xf32> to vector<1x1x8x8xf32>
    tpu.vector_store %arg7[%c0_104, %c2_105, %c0_106, %c0_107], %107 {strides = array<i32>} : memref<1x8x8x8xf32, #tpu.memory_space<vmem>>, vector<1x1x8x8xf32>,
    %c0_108 = arith.constant 0 : index
    %c3_109 = arith.constant 3 : index
    %c0_110 = arith.constant 0 : index
    %c0_111 = arith.constant 0 : index
    %108 = vector.load %arg3[%c0_108, %c3_109, %c0_110, %c0_111] : memref<1x8x8x8xf32, #tpu.memory_space<vmem>>, vector<1x1x8x8xf32>
    %109 = vector.shape_cast %108 : vector<1x1x8x8xf32> to vector<8x8xf32>
    %c3_112 = arith.constant 3 : index
    %110 = memref.load %arg6[%c3_112] : memref<8xf32, #tpu.memory_space<smem>>
    %111 = vector.broadcast %110 : f32 to vector<8x8xf32>
    %112 = arith.addf %109, %111 : vector<8x8xf32>
    %c3_113 = arith.constant 3 : index
    %c0_114 = arith.constant 0 : index
    %113 = memref.load %arg5[%c3_113, %c0_114] : memref<8x4xf32, #tpu.memory_space<smem>>
    %c0_115 = arith.constant 0 : index
    %c0_116 = arith.constant 0 : index
    %c0_117 = arith.constant 0 : index
    %c0_118 = arith.constant 0 : index
    %114 = vector.load %arg8[%c0_115, %c0_116, %c0_117, %c0_118] : memref<1x4x8x8xf32, #tpu.memory_space<vmem>>, vector<1x1x8x8xf32>
    %115 = vector.shape_cast %114 : vector<1x1x8x8xf32> to vector<8x8xf32>
    %116 = vector.broadcast %113 : f32 to vector<8x8xf32>
    %117 = arith.mulf %116, %115 : vector<8x8xf32>
    %118 = arith.addf %112, %117 : vector<8x8xf32>
    %c3_119 = arith.constant 3 : index
    %c1_120 = arith.constant 1 : index
    %119 = memref.load %arg5[%c3_119, %c1_120] : memref<8x4xf32, #tpu.memory_space<smem>>
    %c0_121 = arith.constant 0 : index
    %c1_122 = arith.constant 1 : index
    %c0_123 = arith.constant 0 : index
    %c0_124 = arith.constant 0 : index
    %120 = vector.load %arg8[%c0_121, %c1_122, %c0_123, %c0_124] : memref<1x4x8x8xf32, #tpu.memory_space<vmem>>, vector<1x1x8x8xf32>
    %121 = vector.shape_cast %120 : vector<1x1x8x8xf32> to vector<8x8xf32>
    %122 = vector.broadcast %119 : f32 to vector<8x8xf32>
    %123 = arith.mulf %122, %121 : vector<8x8xf32>
    %124 = arith.addf %118, %123 : vector<8x8xf32>
    %c3_125 = arith.constant 3 : index
    %c2_126 = arith.constant 2 : index
    %125 = memref.load %arg5[%c3_125, %c2_126] : memref<8x4xf32, #tpu.memory_space<smem>>
    %c0_127 = arith.constant 0 : index
    %c2_128 = arith.constant 2 : index
    %c0_129 = arith.constant 0 : index
    %c0_130 = arith.constant 0 : index
    %126 = vector.load %arg8[%c0_127, %c2_128, %c0_129, %c0_130] : memref<1x4x8x8xf32, #tpu.memory_space<vmem>>, vector<1x1x8x8xf32>
    %127 = vector.shape_cast %126 : vector<1x1x8x8xf32> to vector<8x8xf32>
    %128 = vector.broadcast %125 : f32 to vector<8x8xf32>
    %129 = arith.mulf %128, %127 : vector<8x8xf32>
    %130 = arith.addf %124, %129 : vector<8x8xf32>
    %c3_131 = arith.constant 3 : index
    %c3_132 = arith.constant 3 : index
    %131 = memref.load %arg5[%c3_131, %c3_132] : memref<8x4xf32, #tpu.memory_space<smem>>
    %c0_133 = arith.constant 0 : index
    %c3_134 = arith.constant 3 : index
    %c0_135 = arith.constant 0 : index
    %c0_136 = arith.constant 0 : index
    %132 = vector.load %arg8[%c0_133, %c3_134, %c0_135, %c0_136] : memref<1x4x8x8xf32, #tpu.memory_space<vmem>>, vector<1x1x8x8xf32>
    %133 = vector.shape_cast %132 : vector<1x1x8x8xf32> to vector<8x8xf32>
    %134 = vector.broadcast %131 : f32 to vector<8x8xf32>
    %135 = arith.mulf %134, %133 : vector<8x8xf32>
    %136 = arith.addf %130, %135 : vector<8x8xf32>
    %c0_137 = arith.constant 0 : index
    %c3_138 = arith.constant 3 : index
    %c0_139 = arith.constant 0 : index
    %c0_140 = arith.constant 0 : index
    %137 = vector.load %arg7[%c0_137, %c3_138, %c0_139, %c0_140] : memref<1x8x8x8xf32, #tpu.memory_space<vmem>>, vector<1x1x8x8xf32>
    %138 = vector.shape_cast %137 : vector<1x1x8x8xf32> to vector<8x8xf32>
    %139 = vector.shape_cast %136 : vector<8x8xf32> to vector<1x1x8x8xf32>
    tpu.vector_store %arg7[%c0_137, %c3_138, %c0_139, %c0_140], %139 {strides = array<i32>} : memref<1x8x8x8xf32, #tpu.memory_space<vmem>>, vector<1x1x8x8xf32>,
    %c0_141 = arith.constant 0 : index
    %c4 = arith.constant 4 : index
    %c0_142 = arith.constant 0 : index
    %c0_143 = arith.constant 0 : index
    %140 = vector.load %arg3[%c0_141, %c4, %c0_142, %c0_143] : memref<1x8x8x8xf32, #tpu.memory_space<vmem>>, vector<1x1x8x8xf32>
    %141 = vector.shape_cast %140 : vector<1x1x8x8xf32> to vector<8x8xf32>
    %c4_144 = arith.constant 4 : index
    %142 = memref.load %arg6[%c4_144] : memref<8xf32, #tpu.memory_space<smem>>
    %143 = vector.broadcast %142 : f32 to vector<8x8xf32>
    %144 = arith.addf %141, %143 : vector<8x8xf32>
    %c4_145 = arith.constant 4 : index
    %c0_146 = arith.constant 0 : index
    %145 = memref.load %arg5[%c4_145, %c0_146] : memref<8x4xf32, #tpu.memory_space<smem>>
    %c0_147 = arith.constant 0 : index
    %c0_148 = arith.constant 0 : index
    %c0_149 = arith.constant 0 : index
    %c0_150 = arith.constant 0 : index
    %146 = vector.load %arg8[%c0_147, %c0_148, %c0_149, %c0_150] : memref<1x4x8x8xf32, #tpu.memory_space<vmem>>, vector<1x1x8x8xf32>
    %147 = vector.shape_cast %146 : vector<1x1x8x8xf32> to vector<8x8xf32>
    %148 = vector.broadcast %145 : f32 to vector<8x8xf32>
    %149 = arith.mulf %148, %147 : vector<8x8xf32>
    %150 = arith.addf %144, %149 : vector<8x8xf32>
    %c4_151 = arith.constant 4 : index
    %c1_152 = arith.constant 1 : index
    %151 = memref.load %arg5[%c4_151, %c1_152] : memref<8x4xf32, #tpu.memory_space<smem>>
    %c0_153 = arith.constant 0 : index
    %c1_154 = arith.constant 1 : index
    %c0_155 = arith.constant 0 : index
    %c0_156 = arith.constant 0 : index
    %152 = vector.load %arg8[%c0_153, %c1_154, %c0_155, %c0_156] : memref<1x4x8x8xf32, #tpu.memory_space<vmem>>, vector<1x1x8x8xf32>
    %153 = vector.shape_cast %152 : vector<1x1x8x8xf32> to vector<8x8xf32>
    %154 = vector.broadcast %151 : f32 to vector<8x8xf32>
    %155 = arith.mulf %154, %153 : vector<8x8xf32>
    %156 = arith.addf %150, %155 : vector<8x8xf32>
    %c4_157 = arith.constant 4 : index
    %c2_158 = arith.constant 2 : index
    %157 = memref.load %arg5[%c4_157, %c2_158] : memref<8x4xf32, #tpu.memory_space<smem>>
    %c0_159 = arith.constant 0 : index
    %c2_160 = arith.constant 2 : index
    %c0_161 = arith.constant 0 : index
    %c0_162 = arith.constant 0 : index
    %158 = vector.load %arg8[%c0_159, %c2_160, %c0_161, %c0_162] : memref<1x4x8x8xf32, #tpu.memory_space<vmem>>, vector<1x1x8x8xf32>
    %159 = vector.shape_cast %158 : vector<1x1x8x8xf32> to vector<8x8xf32>
    %160 = vector.broadcast %157 : f32 to vector<8x8xf32>
    %161 = arith.mulf %160, %159 : vector<8x8xf32>
    %162 = arith.addf %156, %161 : vector<8x8xf32>
    %c4_163 = arith.constant 4 : index
    %c3_164 = arith.constant 3 : index
    %163 = memref.load %arg5[%c4_163, %c3_164] : memref<8x4xf32, #tpu.memory_space<smem>>
    %c0_165 = arith.constant 0 : index
    %c3_166 = arith.constant 3 : index
    %c0_167 = arith.constant 0 : index
    %c0_168 = arith.constant 0 : index
    %164 = vector.load %arg8[%c0_165, %c3_166, %c0_167, %c0_168] : memref<1x4x8x8xf32, #tpu.memory_space<vmem>>, vector<1x1x8x8xf32>
    %165 = vector.shape_cast %164 : vector<1x1x8x8xf32> to vector<8x8xf32>
    %166 = vector.broadcast %163 : f32 to vector<8x8xf32>
    %167 = arith.mulf %166, %165 : vector<8x8xf32>
    %168 = arith.addf %162, %167 : vector<8x8xf32>
    %c0_169 = arith.constant 0 : index
    %c4_170 = arith.constant 4 : index
    %c0_171 = arith.constant 0 : index
    %c0_172 = arith.constant 0 : index
    %169 = vector.load %arg7[%c0_169, %c4_170, %c0_171, %c0_172] : memref<1x8x8x8xf32, #tpu.memory_space<vmem>>, vector<1x1x8x8xf32>
    %170 = vector.shape_cast %169 : vector<1x1x8x8xf32> to vector<8x8xf32>
    %171 = vector.shape_cast %168 : vector<8x8xf32> to vector<1x1x8x8xf32>
    tpu.vector_store %arg7[%c0_169, %c4_170, %c0_171, %c0_172], %171 {strides = array<i32>} : memref<1x8x8x8xf32, #tpu.memory_space<vmem>>, vector<1x1x8x8xf32>,
    %c0_173 = arith.constant 0 : index
    %c5 = arith.constant 5 : index
    %c0_174 = arith.constant 0 : index
    %c0_175 = arith.constant 0 : index
    %172 = vector.load %arg3[%c0_173, %c5, %c0_174, %c0_175] : memref<1x8x8x8xf32, #tpu.memory_space<vmem>>, vector<1x1x8x8xf32>
    %173 = vector.shape_cast %172 : vector<1x1x8x8xf32> to vector<8x8xf32>
    %c5_176 = arith.constant 5 : index
    %174 = memref.load %arg6[%c5_176] : memref<8xf32, #tpu.memory_space<smem>>
    %175 = vector.broadcast %174 : f32 to vector<8x8xf32>
    %176 = arith.addf %173, %175 : vector<8x8xf32>
    %c5_177 = arith.constant 5 : index
    %c0_178 = arith.constant 0 : index
    %177 = memref.load %arg5[%c5_177, %c0_178] : memref<8x4xf32, #tpu.memory_space<smem>>
    %c0_179 = arith.constant 0 : index
    %c0_180 = arith.constant 0 : index
    %c0_181 = arith.constant 0 : index
    %c0_182 = arith.constant 0 : index
    %178 = vector.load %arg8[%c0_179, %c0_180, %c0_181, %c0_182] : memref<1x4x8x8xf32, #tpu.memory_space<vmem>>, vector<1x1x8x8xf32>
    %179 = vector.shape_cast %178 : vector<1x1x8x8xf32> to vector<8x8xf32>
    %180 = vector.broadcast %177 : f32 to vector<8x8xf32>
    %181 = arith.mulf %180, %179 : vector<8x8xf32>
    %182 = arith.addf %176, %181 : vector<8x8xf32>
    %c5_183 = arith.constant 5 : index
    %c1_184 = arith.constant 1 : index
    %183 = memref.load %arg5[%c5_183, %c1_184] : memref<8x4xf32, #tpu.memory_space<smem>>
    %c0_185 = arith.constant 0 : index
    %c1_186 = arith.constant 1 : index
    %c0_187 = arith.constant 0 : index
    %c0_188 = arith.constant 0 : index
    %184 = vector.load %arg8[%c0_185, %c1_186, %c0_187, %c0_188] : memref<1x4x8x8xf32, #tpu.memory_space<vmem>>, vector<1x1x8x8xf32>
    %185 = vector.shape_cast %184 : vector<1x1x8x8xf32> to vector<8x8xf32>
    %186 = vector.broadcast %183 : f32 to vector<8x8xf32>
    %187 = arith.mulf %186, %185 : vector<8x8xf32>
    %188 = arith.addf %182, %187 : vector<8x8xf32>
    %c5_189 = arith.constant 5 : index
    %c2_190 = arith.constant 2 : index
    %189 = memref.load %arg5[%c5_189, %c2_190] : memref<8x4xf32, #tpu.memory_space<smem>>
    %c0_191 = arith.constant 0 : index
    %c2_192 = arith.constant 2 : index
    %c0_193 = arith.constant 0 : index
    %c0_194 = arith.constant 0 : index
    %190 = vector.load %arg8[%c0_191, %c2_192, %c0_193, %c0_194] : memref<1x4x8x8xf32, #tpu.memory_space<vmem>>, vector<1x1x8x8xf32>
    %191 = vector.shape_cast %190 : vector<1x1x8x8xf32> to vector<8x8xf32>
    %192 = vector.broadcast %189 : f32 to vector<8x8xf32>
    %193 = arith.mulf %192, %191 : vector<8x8xf32>
    %194 = arith.addf %188, %193 : vector<8x8xf32>
    %c5_195 = arith.constant 5 : index
    %c3_196 = arith.constant 3 : index
    %195 = memref.load %arg5[%c5_195, %c3_196] : memref<8x4xf32, #tpu.memory_space<smem>>
    %c0_197 = arith.constant 0 : index
    %c3_198 = arith.constant 3 : index
    %c0_199 = arith.constant 0 : index
    %c0_200 = arith.constant 0 : index
    %196 = vector.load %arg8[%c0_197, %c3_198, %c0_199, %c0_200] : memref<1x4x8x8xf32, #tpu.memory_space<vmem>>, vector<1x1x8x8xf32>
    %197 = vector.shape_cast %196 : vector<1x1x8x8xf32> to vector<8x8xf32>
    %198 = vector.broadcast %195 : f32 to vector<8x8xf32>
    %199 = arith.mulf %198, %197 : vector<8x8xf32>
    %200 = arith.addf %194, %199 : vector<8x8xf32>
    %c0_201 = arith.constant 0 : index
    %c5_202 = arith.constant 5 : index
    %c0_203 = arith.constant 0 : index
    %c0_204 = arith.constant 0 : index
    %201 = vector.load %arg7[%c0_201, %c5_202, %c0_203, %c0_204] : memref<1x8x8x8xf32, #tpu.memory_space<vmem>>, vector<1x1x8x8xf32>
    %202 = vector.shape_cast %201 : vector<1x1x8x8xf32> to vector<8x8xf32>
    %203 = vector.shape_cast %200 : vector<8x8xf32> to vector<1x1x8x8xf32>
    tpu.vector_store %arg7[%c0_201, %c5_202, %c0_203, %c0_204], %203 {strides = array<i32>} : memref<1x8x8x8xf32, #tpu.memory_space<vmem>>, vector<1x1x8x8xf32>,
    %c0_205 = arith.constant 0 : index
    %c6 = arith.constant 6 : index
    %c0_206 = arith.constant 0 : index
    %c0_207 = arith.constant 0 : index
    %204 = vector.load %arg3[%c0_205, %c6, %c0_206, %c0_207] : memref<1x8x8x8xf32, #tpu.memory_space<vmem>>, vector<1x1x8x8xf32>
    %205 = vector.shape_cast %204 : vector<1x1x8x8xf32> to vector<8x8xf32>
    %c6_208 = arith.constant 6 : index
    %206 = memref.load %arg6[%c6_208] : memref<8xf32, #tpu.memory_space<smem>>
    %207 = vector.broadcast %206 : f32 to vector<8x8xf32>
    %208 = arith.addf %205, %207 : vector<8x8xf32>
    %c6_209 = arith.constant 6 : index
    %c0_210 = arith.constant 0 : index
    %209 = memref.load %arg5[%c6_209, %c0_210] : memref<8x4xf32, #tpu.memory_space<smem>>
    %c0_211 = arith.constant 0 : index
    %c0_212 = arith.constant 0 : index
    %c0_213 = arith.constant 0 : index
    %c0_214 = arith.constant 0 : index
    %210 = vector.load %arg8[%c0_211, %c0_212, %c0_213, %c0_214] : memref<1x4x8x8xf32, #tpu.memory_space<vmem>>, vector<1x1x8x8xf32>
    %211 = vector.shape_cast %210 : vector<1x1x8x8xf32> to vector<8x8xf32>
    %212 = vector.broadcast %209 : f32 to vector<8x8xf32>
    %213 = arith.mulf %212, %211 : vector<8x8xf32>
    %214 = arith.addf %208, %213 : vector<8x8xf32>
    %c6_215 = arith.constant 6 : index
    %c1_216 = arith.constant 1 : index
    %215 = memref.load %arg5[%c6_215, %c1_216] : memref<8x4xf32, #tpu.memory_space<smem>>
    %c0_217 = arith.constant 0 : index
    %c1_218 = arith.constant 1 : index
    %c0_219 = arith.constant 0 : index
    %c0_220 = arith.constant 0 : index
    %216 = vector.load %arg8[%c0_217, %c1_218, %c0_219, %c0_220] : memref<1x4x8x8xf32, #tpu.memory_space<vmem>>, vector<1x1x8x8xf32>
    %217 = vector.shape_cast %216 : vector<1x1x8x8xf32> to vector<8x8xf32>
    %218 = vector.broadcast %215 : f32 to vector<8x8xf32>
    %219 = arith.mulf %218, %217 : vector<8x8xf32>
    %220 = arith.addf %214, %219 : vector<8x8xf32>
    %c6_221 = arith.constant 6 : index
    %c2_222 = arith.constant 2 : index
    %221 = memref.load %arg5[%c6_221, %c2_222] : memref<8x4xf32, #tpu.memory_space<smem>>
    %c0_223 = arith.constant 0 : index
    %c2_224 = arith.constant 2 : index
    %c0_225 = arith.constant 0 : index
    %c0_226 = arith.constant 0 : index
    %222 = vector.load %arg8[%c0_223, %c2_224, %c0_225, %c0_226] : memref<1x4x8x8xf32, #tpu.memory_space<vmem>>, vector<1x1x8x8xf32>
    %223 = vector.shape_cast %222 : vector<1x1x8x8xf32> to vector<8x8xf32>
    %224 = vector.broadcast %221 : f32 to vector<8x8xf32>
    %225 = arith.mulf %224, %223 : vector<8x8xf32>
    %226 = arith.addf %220, %225 : vector<8x8xf32>
    %c6_227 = arith.constant 6 : index
    %c3_228 = arith.constant 3 : index
    %227 = memref.load %arg5[%c6_227, %c3_228] : memref<8x4xf32, #tpu.memory_space<smem>>
    %c0_229 = arith.constant 0 : index
    %c3_230 = arith.constant 3 : index
    %c0_231 = arith.constant 0 : index
    %c0_232 = arith.constant 0 : index
    %228 = vector.load %arg8[%c0_229, %c3_230, %c0_231, %c0_232] : memref<1x4x8x8xf32, #tpu.memory_space<vmem>>, vector<1x1x8x8xf32>
    %229 = vector.shape_cast %228 : vector<1x1x8x8xf32> to vector<8x8xf32>
    %230 = vector.broadcast %227 : f32 to vector<8x8xf32>
    %231 = arith.mulf %230, %229 : vector<8x8xf32>
    %232 = arith.addf %226, %231 : vector<8x8xf32>
    %c0_233 = arith.constant 0 : index
    %c6_234 = arith.constant 6 : index
    %c0_235 = arith.constant 0 : index
    %c0_236 = arith.constant 0 : index
    %233 = vector.load %arg7[%c0_233, %c6_234, %c0_235, %c0_236] : memref<1x8x8x8xf32, #tpu.memory_space<vmem>>, vector<1x1x8x8xf32>
    %234 = vector.shape_cast %233 : vector<1x1x8x8xf32> to vector<8x8xf32>
    %235 = vector.shape_cast %232 : vector<8x8xf32> to vector<1x1x8x8xf32>
    tpu.vector_store %arg7[%c0_233, %c6_234, %c0_235, %c0_236], %235 {strides = array<i32>} : memref<1x8x8x8xf32, #tpu.memory_space<vmem>>, vector<1x1x8x8xf32>,
    %c0_237 = arith.constant 0 : index
    %c7 = arith.constant 7 : index
    %c0_238 = arith.constant 0 : index
    %c0_239 = arith.constant 0 : index
    %236 = vector.load %arg3[%c0_237, %c7, %c0_238, %c0_239] : memref<1x8x8x8xf32, #tpu.memory_space<vmem>>, vector<1x1x8x8xf32>
    %237 = vector.shape_cast %236 : vector<1x1x8x8xf32> to vector<8x8xf32>
    %c7_240 = arith.constant 7 : index
    %238 = memref.load %arg6[%c7_240] : memref<8xf32, #tpu.memory_space<smem>>
    %239 = vector.broadcast %238 : f32 to vector<8x8xf32>
    %240 = arith.addf %237, %239 : vector<8x8xf32>
    %c7_241 = arith.constant 7 : index
    %c0_242 = arith.constant 0 : index
    %241 = memref.load %arg5[%c7_241, %c0_242] : memref<8x4xf32, #tpu.memory_space<smem>>
    %c0_243 = arith.constant 0 : index
    %c0_244 = arith.constant 0 : index
    %c0_245 = arith.constant 0 : index
    %c0_246 = arith.constant 0 : index
    %242 = vector.load %arg8[%c0_243, %c0_244, %c0_245, %c0_246] : memref<1x4x8x8xf32, #tpu.memory_space<vmem>>, vector<1x1x8x8xf32>
    %243 = vector.shape_cast %242 : vector<1x1x8x8xf32> to vector<8x8xf32>
    %244 = vector.broadcast %241 : f32 to vector<8x8xf32>
    %245 = arith.mulf %244, %243 : vector<8x8xf32>
    %246 = arith.addf %240, %245 : vector<8x8xf32>
    %c7_247 = arith.constant 7 : index
    %c1_248 = arith.constant 1 : index
    %247 = memref.load %arg5[%c7_247, %c1_248] : memref<8x4xf32, #tpu.memory_space<smem>>
    %c0_249 = arith.constant 0 : index
    %c1_250 = arith.constant 1 : index
    %c0_251 = arith.constant 0 : index
    %c0_252 = arith.constant 0 : index
    %248 = vector.load %arg8[%c0_249, %c1_250, %c0_251, %c0_252] : memref<1x4x8x8xf32, #tpu.memory_space<vmem>>, vector<1x1x8x8xf32>
    %249 = vector.shape_cast %248 : vector<1x1x8x8xf32> to vector<8x8xf32>
    %250 = vector.broadcast %247 : f32 to vector<8x8xf32>
    %251 = arith.mulf %250, %249 : vector<8x8xf32>
    %252 = arith.addf %246, %251 : vector<8x8xf32>
    %c7_253 = arith.constant 7 : index
    %c2_254 = arith.constant 2 : index
    %253 = memref.load %arg5[%c7_253, %c2_254] : memref<8x4xf32, #tpu.memory_space<smem>>
    %c0_255 = arith.constant 0 : index
    %c2_256 = arith.constant 2 : index
    %c0_257 = arith.constant 0 : index
    %c0_258 = arith.constant 0 : index
    %254 = vector.load %arg8[%c0_255, %c2_256, %c0_257, %c0_258] : memref<1x4x8x8xf32, #tpu.memory_space<vmem>>, vector<1x1x8x8xf32>
    %255 = vector.shape_cast %254 : vector<1x1x8x8xf32> to vector<8x8xf32>
    %256 = vector.broadcast %253 : f32 to vector<8x8xf32>
    %257 = arith.mulf %256, %255 : vector<8x8xf32>
    %258 = arith.addf %252, %257 : vector<8x8xf32>
    %c7_259 = arith.constant 7 : index
    %c3_260 = arith.constant 3 : index
    %259 = memref.load %arg5[%c7_259, %c3_260] : memref<8x4xf32, #tpu.memory_space<smem>>
    %c0_261 = arith.constant 0 : index
    %c3_262 = arith.constant 3 : index
    %c0_263 = arith.constant 0 : index
    %c0_264 = arith.constant 0 : index
    %260 = vector.load %arg8[%c0_261, %c3_262, %c0_263, %c0_264] : memref<1x4x8x8xf32, #tpu.memory_space<vmem>>, vector<1x1x8x8xf32>
    %261 = vector.shape_cast %260 : vector<1x1x8x8xf32> to vector<8x8xf32>
    %262 = vector.broadcast %259 : f32 to vector<8x8xf32>
    %263 = arith.mulf %262, %261 : vector<8x8xf32>
    %264 = arith.addf %258, %263 : vector<8x8xf32>
    %c0_265 = arith.constant 0 : index
    %c7_266 = arith.constant 7 : index
    %c0_267 = arith.constant 0 : index
    %c0_268 = arith.constant 0 : index
    %265 = vector.load %arg7[%c0_265, %c7_266, %c0_267, %c0_268] : memref<1x8x8x8xf32, #tpu.memory_space<vmem>>, vector<1x1x8x8xf32>
    %266 = vector.shape_cast %265 : vector<1x1x8x8xf32> to vector<8x8xf32>
    %267 = vector.shape_cast %264 : vector<8x8xf32> to vector<1x1x8x8xf32>
    tpu.vector_store %arg7[%c0_265, %c7_266, %c0_267, %c0_268], %267 {strides = array<i32>} : memref<1x8x8x8xf32, #tpu.memory_space<vmem>>, vector<1x1x8x8xf32>,
    return
  }
  func.func @transform_0(%arg0: i32, %arg1: i32) -> (i32, i32, i32, i32) {
    %c0_i32 = arith.constant 0 : i32
    %c0_i32_0 = arith.constant 0 : i32
    %c0_i32_1 = arith.constant 0 : i32
    return %arg0, %c0_i32, %arg1, %c0_i32_0 : i32, i32, i32, i32
  }
  func.func @transform_1(%arg0: i32, %arg1: i32) -> (i32, i32, i32, i32) {
    %c0_i32 = arith.constant 0 : i32
    %c0_i32_0 = arith.constant 0 : i32
    %c0_i32_1 = arith.constant 0 : i32
    return %arg0, %c0_i32, %arg1, %c0_i32_0 : i32, i32, i32, i32
  }
  func.func @transform_2(%arg0: i32, %arg1: i32) -> (i32, i32) {
    %c0_i32 = arith.constant 0 : i32
    %c0_i32_0 = arith.constant 0 : i32
    %c0_i32_1 = arith.constant 0 : i32
    return %c0_i32, %c0_i32_0 : i32, i32
  }
  func.func @transform_3(%arg0: i32, %arg1: i32) -> (i32, i32) {
    %c0_i32 = arith.constant 0 : i32
    %c0_i32_0 = arith.constant 0 : i32
    %c0_i32_1 = arith.constant 0 : i32
    return %c0_i32, %c0_i32_0 : i32, i32
  }
  func.func @transform_4(%arg0: i32, %arg1: i32) -> i32 {
    %c0_i32 = arith.constant 0 : i32
    %c0_i32_0 = arith.constant 0 : i32
    return %c0_i32 : i32
  }
  func.func @transform_5(%arg0: i32, %arg1: i32) -> (i32, i32, i32, i32) {
    %c0_i32 = arith.constant 0 : i32
    %c0_i32_0 = arith.constant 0 : i32
    %c0_i32_1 = arith.constant 0 : i32
    return %arg0, %c0_i32, %arg1, %c0_i32_0 : i32, i32, i32, i32
  }
  func.func @transform_6(%arg0: i32, %arg1: i32) -> (i32, i32, i32, i32) {
    %c0_i32 = arith.constant 0 : i32
    %c0_i32_0 = arith.constant 0 : i32
    %c0_i32_1 = arith.constant 0 : i32
    return %arg0, %c0_i32, %arg1, %c0_i32_0 : i32, i32, i32, i32
  }
}

</mosaic_0001>

<llo_original>
// kernel: progressive_down.1
$region0: #{progressive_down.1}
  #allocation0 [shape = 'u32[]', space=smem, size = 0x4, offset = 0x4, fixed_abs, tag = 'smem constant byte address 0x4 - core index']
  #allocation1 [shape = 'u32[144,128]{1,0:T(1,128)}', space=vmem, size = 0x12000, scoped, tag = 'internal scratch']
  %s0 = inlined_call_operand.vmem [shape: f32[2,4,8,32], index: 0, kind: input, shape index: {}]
  %s1 = inlined_call_operand.vmem [shape: f32[2,8,8,8], index: 1, kind: input, shape index: {}]
  %s2 = inlined_call_operand.vmem [shape: f32[16,8], index: 2, kind: input, shape index: {}]
  %s3 = inlined_call_operand.vmem [shape: f32[8,4], index: 3, kind: input, shape index: {}]
  %s4 = inlined_call_operand.vmem [shape: f32[8], index: 4, kind: input, shape index: {}]
  %s5 = inlined_call_operand.hbm [shape: f32[2,8,8,8], index: 5, kind: output, shape index: {0}]
  %s6 = inlined_call_operand.hbm [shape: f32[2,4,8,8], index: 6, kind: output, shape index: {1}]
  %7 = xla_tuple %s5, %s6
  %s8 = sld [smem:[#allocation0]]
  $region69: #{progressive_down.1} parent=0
    _
  %s10 = ssub.s32 1, %s8
  %s11 = scalar_select 0, %s10, %s8
  $region1: #{progressive_down.1} parent=0
    #allocation2 [shape = 'u8[4096]{0}', space=smem, size = 0x1000, scoped, tag = 'input window, operand 3, single buffered']
    #allocation3 [shape = 's32[2]{0}', space=sflag, size = 0x8, scoped, tag = 'scoped memory for progressive_down.1']
    #allocation4 [shape = 's32[2]{0}', space=sflag, size = 0x8, scoped, tag = 'scoped memory for progressive_down.1']
    #allocation5 [shape = 'u8[512]{0}', space=smem, size = 0x200, scoped, tag = 'input window, operand 4, single buffered']
    #allocation6 [shape = 's32[1]{0}', space=sflag, size = 0x4, scoped, tag = 'scoped memory for progressive_down.1']
    #allocation7 [shape = 'u8[65536]{0}', space=vmem, size = 0x10000, scoped, tag = 'output window, operand 0']
    #allocation8 [shape = 'u8[32768]{0}', space=vmem, size = 0x8000, scoped, tag = 'output window, operand 1']
    #allocation9 [shape = 's32[2]{0}', space=sflag, size = 0x8, scoped, tag = 'scoped memory for progressive_down.1']
    %12 = vsyncpa [#allocation4], 0
    %13 = vsyncpa [#allocation6], 0
    %14 = vsyncpa [#allocation3], 0
    %s15 = scalar_lea.sflag [#allocation3], 1
    %16 = vsyncpa %s15, 0
    %17 = vsyncpa [#allocation9], 0
    %s18 = scalar_lea.sflag [#allocation9], 1
    %19 = vsyncpa %s18, 0
    loop: start=0, step=1, limit=4
    $region2: #{progressive_down.1} parent=1 // loop_pre_header
      _
    $region3: #{progressive_down.1} parent=1 // loop_header
      %s21 = sphi 0, %s25
      %p22 = scmp.ge.s32.totalorder %s21, 4
      %s28 = sphi 0, %s40
      %s29 = sphi 0, %s36
      %s30 = sphi 0, %s28
      %s31 = sphi 0, %s29
      %s32 = sphi 0, %s30
      %s33 = sphi 0, %s31
      %s45 = sphi 0, %s47
      %s48 = sphi 0, %s45
      %s49 = sphi 0, %s48
      %s65 = sphi 0, %s49
      %s73 = sphi 0, %s75
      %s76 = sphi 0, %s73
      %s77 = sphi 0, %s76
      %s93 = sphi 0, %s77
      %s97 = sphi 0, %s97
      %s99 = sphi 0, %s97
      %s100 = sphi 0, %s99
      %s114 = sphi 0, %s100
      %s118 = sphi 0, %s118
      %s120 = sphi 0, %s118
      %s121 = sphi 0, %s120
      %s135 = sphi 0, %s121
      %s139 = sphi 0, %s139
      %s141 = sphi 0, %s139
      %s142 = sphi 0, %s141
      %s156 = sphi 0, %s142
      %s164 = sphi 0, %s166
      %s167 = sphi 0, %s164
      %s168 = sphi 0, %s167
      %s184 = sphi 0, %s168
      %s192 = sphi 0, %s194
      %s195 = sphi 0, %s192
      %s196 = sphi 0, %s195
      %s212 = sphi 0, %s196
    $region4: #{progressive_down.1} parent=1 // loop_header_branch
      %24 = sbr.rel (%p22) target = $region8
    $region5: #{progressive_down.1} parent=1 // loop_body
      %s26 = ssub.s32 %s21, 1
      %s27 = ssub.s32 %s21, 2
      %s34 = sadd.s32 1, %s29
      %p35 = scmp.ge.s32.totalorder %s34, 1
      %s36 = scalar_select %p35, 0, %s34
      %s37 = sadd.s32 1, %s28
      %s38 = scalar_select %p35, %s37, %s28
      %p39 = scmp.ge.s32.totalorder %s38, 2
      %s40 = scalar_select %p39, 0, %s38
      %s41 = ssub.s32 %s28, %s40
      %s42 = ssub.s32 %s29, %s36
      %s43 = sor.u32 %s41, %s42
      %p44 = scmp.eq.s32.totalorder %s43, 0
      %s46 = sadd.s32 %s45, 1
      %s47 = scalar_select %p44, %s45, %s46
      %p50 = pneg %p44
      %p51 = scmp.eq.s32.totalorder %s21, 1
      %p52 = por %p50, %p51
      %p53 = scmp.ne.s32.totalorder %s45, %s48
      %p54 = scmp.eq.s32.totalorder %s21, 0
      %p55 = por %p53, %p54
      %p56 = scmp.ne.s32.totalorder %s45, %s48
      %p57 = scmp.eq.s32.totalorder %s26, 1
      %p58 = por %p56, %p57
      %p59 = scmp.ne.s32.totalorder %s48, %s49
      %p60 = scmp.eq.s32.totalorder %s26, 0
      %p61 = por %p59, %p60
      %p62 = scmp.ne.s32.totalorder %s48, %s49
      %p63 = scmp.eq.s32.totalorder %s27, 1
      %p64 = por %p62, %p63
      %p66 = scmp.ne.s32.totalorder %s49, %s65
      %p67 = scmp.eq.s32.totalorder %s27, 0
      %p68 = por %p66, %p67
      %s69 = ssub.s32 %s28, %s40
      %s70 = ssub.s32 %s29, %s36
      %s71 = sor.u32 %s69, %s70
      %p72 = scmp.eq.s32.totalorder %s71, 0
      %s74 = sadd.s32 %s73, 1
      %s75 = scalar_select %p72, %s73, %s74
      %p78 = pneg %p72
      %p79 = scmp.eq.s32.totalorder %s21, 1
      %p80 = por %p78, %p79
      %p81 = scmp.ne.s32.totalorder %s73, %s76
      %p82 = scmp.eq.s32.totalorder %s21, 0
      %p83 = por %p81, %p82
      %p84 = scmp.ne.s32.totalorder %s73, %s76
      %p85 = scmp.eq.s32.totalorder %s26, 1
      %p86 = por %p84, %p85
      %p87 = scmp.ne.s32.totalorder %s76, %s77
      %p88 = scmp.eq.s32.totalorder %s26, 0
      %p89 = por %p87, %p88
      %p90 = scmp.ne.s32.totalorder %s76, %s77
      %p91 = scmp.eq.s32.totalorder %s27, 1
      %p92 = por %p90, %p91
      %p94 = scmp.ne.s32.totalorder %s77, %s93
      %p95 = scmp.eq.s32.totalorder %s27, 0
      %p96 = por %p94, %p95
      %s98 = sadd.s32 %s97, 1
      %p101 = scmp.eq.s32.totalorder %s21, 1
      %p102 = scmp.ne.s32.totalorder %s97, %s99
      %p103 = scmp.eq.s32.totalorder %s21, 0
      %p104 = por %p102, %p103
      %p105 = scmp.ne.s32.totalorder %s97, %s99
      %p106 = scmp.eq.s32.totalorder %s26, 1
      %p107 = por %p105, %p106
      %p108 = scmp.ne.s32.totalorder %s99, %s100
      %p109 = scmp.eq.s32.totalorder %s26, 0
      %p110 = por %p108, %p109
      %p111 = scmp.ne.s32.totalorder %s99, %s100
      %p112 = scmp.eq.s32.totalorder %s27, 1
      %p113 = por %p111, %p112
      %p115 = scmp.ne.s32.totalorder %s100, %s114
      %p116 = scmp.eq.s32.totalorder %s27, 0
      %p117 = por %p115, %p116
      %s119 = sadd.s32 %s118, 1
      %p122 = scmp.eq.s32.totalorder %s21, 1
      %p123 = scmp.ne.s32.totalorder %s118, %s120
      %p124 = scmp.eq.s32.totalorder %s21, 0
      %p125 = por %p123, %p124
      %p126 = scmp.ne.s32.totalorder %s118, %s120
      %p127 = scmp.eq.s32.totalorder %s26, 1
      %p128 = por %p126, %p127
      %p129 = scmp.ne.s32.totalorder %s120, %s121
      %p130 = scmp.eq.s32.totalorder %s26, 0
      %p131 = por %p129, %p130
      %p132 = scmp.ne.s32.totalorder %s120, %s121
      %p133 = scmp.eq.s32.totalorder %s27, 1
      %p134 = por %p132, %p133
      %p136 = scmp.ne.s32.totalorder %s121, %s135
      %p137 = scmp.eq.s32.totalorder %s27, 0
      %p138 = por %p136, %p137
      %s140 = sadd.s32 %s139, 1
      %p143 = scmp.eq.s32.totalorder %s21, 1
      %p144 = scmp.ne.s32.totalorder %s139, %s141
      %p145 = scmp.eq.s32.totalorder %s21, 0
      %p146 = por %p144, %p145
      %p147 = scmp.ne.s32.totalorder %s139, %s141
      %p148 = scmp.eq.s32.totalorder %s26, 1
      %p149 = por %p147, %p148
      %p150 = scmp.ne.s32.totalorder %s141, %s142
      %p151 = scmp.eq.s32.totalorder %s26, 0
      %p152 = por %p150, %p151
      %p153 = scmp.ne.s32.totalorder %s141, %s142
      %p154 = scmp.eq.s32.totalorder %s27, 1
      %p155 = por %p153, %p154
      %p157 = scmp.ne.s32.totalorder %s142, %s156
      %p158 = scmp.eq.s32.totalorder %s27, 0
      %p159 = por %p157, %p158
      %s160 = ssub.s32 %s28, %s40
      %s161 = ssub.s32 %s29, %s36
      %s162 = sor.u32 %s160, %s161
      %p163 = scmp.eq.s32.totalorder %s162, 0
      %s165 = sadd.s32 %s164, 1
      %s166 = scalar_select %p163, %s164, %s165
      %p169 = pneg %p163
      %p170 = scmp.eq.s32.totalorder %s21, 1
      %p171 = por %p169, %p170
      %p172 = scmp.ne.s32.totalorder %s164, %s167
      %p173 = scmp.eq.s32.totalorder %s21, 0
      %p174 = por %p172, %p173
      %p175 = scmp.ne.s32.totalorder %s164, %s167
      %p176 = scmp.eq.s32.totalorder %s26, 1
      %p177 = por %p175, %p176
      %p178 = scmp.ne.s32.totalorder %s167, %s168
      %p179 = scmp.eq.s32.totalorder %s26, 0
      %p180 = por %p178, %p179
      %p181 = scmp.ne.s32.totalorder %s167, %s168
      %p182 = scmp.eq.s32.totalorder %s27, 1
      %p183 = por %p181, %p182
      %p185 = scmp.ne.s32.totalorder %s168, %s184
      %p186 = scmp.eq.s32.totalorder %s27, 0
      %p187 = por %p185, %p186
      %s188 = ssub.s32 %s28, %s40
      %s189 = ssub.s32 %s29, %s36
      %s190 = sor.u32 %s188, %s189
      %p191 = scmp.eq.s32.totalorder %s190, 0
      %s193 = sadd.s32 %s192, 1
      %s194 = scalar_select %p191, %s192, %s193
      %p197 = pneg %p191
      %p198 = scmp.eq.s32.totalorder %s21, 1
      %p199 = por %p197, %p198
      %p200 = scmp.ne.s32.totalorder %s192, %s195
      %p201 = scmp.eq.s32.totalorder %s21, 0
      %p202 = por %p200, %p201
      %p203 = scmp.ne.s32.totalorder %s192, %s195
      %p204 = scmp.eq.s32.totalorder %s26, 1
      %p205 = por %p203, %p204
      %p206 = scmp.ne.s32.totalorder %s195, %s196
      %p207 = scmp.eq.s32.totalorder %s26, 0
      %p208 = por %p206, %p207
      %p209 = scmp.ne.s32.totalorder %s195, %s196
      %p210 = scmp.eq.s32.totalorder %s27, 1
      %p211 = por %p209, %p210
      %p213 = scmp.ne.s32.totalorder %s196, %s212
      %p214 = scmp.eq.s32.totalorder %s27, 0
      %p215 = por %p213, %p214
      %p216 = scmp.le.s32.totalorder 1, %s21
      %p217 = scmp.lt.s32.totalorder %s21, 3
      %p218 = pnand %p216, %p217
      %p219 = pneg %p218
      // Predicated region
      $region9: #{progressive_down.1} parent=5 // pred_check
        _
      $region10: #{progressive_down.1} parent=5 // pred_check_branch
        %221 = sbr.rel (%p218) target = $region12
      $region11: #{progressive_down.1} parent=5 // pred_region
        %s222 = ssub.s32 %s21, 1
        // Predicated region
        $region13: #{progressive_down.1} parent=11 // pred_check
          %p223 = pneg %p110
        $region14: #{progressive_down.1} parent=11 // pred_check_branch
          %225 = sbr.rel (%p223) target = $region16
        $region15: #{progressive_down.1} parent=11 // pred_region
          _
        $region16: #{progressive_down.1} parent=11 // pred_fallthru
          _
        // Predicated region
        $region17: #{progressive_down.1} parent=11 // pred_check
          %p226 = pneg %p131
        $region18: #{progressive_down.1} parent=11 // pred_check_branch
          %228 = sbr.rel (%p226) target = $region20
        $region19: #{progressive_down.1} parent=11 // pred_region
          %s230 = ssub.s32 128, 128
          %231 = vsyncadd [#allocation4], %s230
          %s233 = sshll.u32 %s3, 4
          %s234 = int_to_ptr.vmem [resolvable:$true] %s233
          %236 = dma.vmem_to_smem %s234, 128, [#allocation2], [#allocation4]
        $region20: #{progressive_down.1} parent=11 // pred_fallthru
          _
        // Predicated region
        $region21: #{progressive_down.1} parent=11 // pred_check
          %p237 = pneg %p152
        $region22: #{progressive_down.1} parent=11 // pred_check_branch
          %239 = sbr.rel (%p237) target = $region24
        $region23: #{progressive_down.1} parent=11 // pred_region
          %s241 = ssub.s32 16, 16
          %242 = vsyncadd [#allocation6], %s241
          %s244 = sshll.u32 %s4, 4
          %s245 = int_to_ptr.vmem [resolvable:$true] %s244
          %247 = dma.vmem_to_smem %s245, 16, [#allocation5], [#allocation6]
        $region24: #{progressive_down.1} parent=11 // pred_fallthru
          _
      $region12: #{progressive_down.1} parent=5 // pred_fallthru
        _
      %p248 = scmp.lt.s32.totalorder %s21, 2
      // Predicated region
      $region25: #{progressive_down.1} parent=5 // pred_check
        %p249 = pneg %p248
      $region26: #{progressive_down.1} parent=5 // pred_check_branch
        %251 = sbr.rel (%p249) target = $region28
      $region27: #{progressive_down.1} parent=5 // pred_region
        // Predicated region
        $region29: #{progressive_down.1} parent=27 // pred_check
          %p252 = pneg %p55
        $region30: #{progressive_down.1} parent=27 // pred_check_branch
          %254 = sbr.rel (%p252) target = $region32
        $region31: #{progressive_down.1} parent=27 // pred_region
          %p255 = scmp.lt.s32.totalorder %s28, 1
          %s256 = scalar_select %p255, %s28, 1
          %p257 = scmp.lt.s32.totalorder %s29, 0
          %s258 = scalar_select %p257, %s29, 0
          %s259 = smul.addr %s256, 4
          %s260 = sadd.s32 %s258, %s259
          %s261 = smul.addr %s260, 8
          %s262 = scalar_lea.vmem %s0, %s261
        $region32: #{progressive_down.1} parent=27 // pred_fallthru
          _
        // Predicated region
        $region33: #{progressive_down.1} parent=27 // pred_check
          %p263 = pneg %p83
        $region34: #{progressive_down.1} parent=27 // pred_check_branch
          %265 = sbr.rel (%p263) target = $region36
        $region35: #{progressive_down.1} parent=27 // pred_region
          %p266 = scmp.lt.s32.totalorder %s28, 1
          %s267 = scalar_select %p266, %s28, 1
          %p268 = scmp.lt.s32.totalorder %s29, 0
          %s269 = scalar_select %p268, %s29, 0
          %s270 = smul.addr %s267, 8
          %s271 = sadd.s32 %s269, %s270
          %s272 = smul.addr %s271, 8
          %s273 = scalar_lea.vmem %s1, %s272
        $region36: #{progressive_down.1} parent=27 // pred_fallthru
          _
      $region28: #{progressive_down.1} parent=5 // pred_fallthru
        _
      %p274 = scmp.le.s32.totalorder 1, %s21
      %p275 = scmp.lt.s32.totalorder %s21, 3
      %p276 = pnand %p274, %p275
      %p277 = pneg %p276
      // Predicated region
      $region37: #{progressive_down.1} parent=5 // pred_check
        _
      $region38: #{progressive_down.1} parent=5 // pred_check_branch
        %279 = sbr.rel (%p276) target = $region40
      $region39: #{progressive_down.1} parent=5 // pred_region
        %s280 = ssub.s32 %s21, 1
        // Predicated region
        $region41: #{progressive_down.1} parent=39 // pred_check
          %p281 = pneg %p131
        $region42: #{progressive_down.1} parent=39 // pred_check_branch
          %283 = sbr.rel (%p281) target = $region44
        $region43: #{progressive_down.1} parent=39 // pred_region
          %284 = dma.done [#allocation4], 128
        $region44: #{progressive_down.1} parent=39 // pred_fallthru
          _
        // Predicated region
        $region45: #{progressive_down.1} parent=39 // pred_check
          %p285 = pneg %p152
        $region46: #{progressive_down.1} parent=39 // pred_check_branch
          %287 = sbr.rel (%p285) target = $region48
        $region47: #{progressive_down.1} parent=39 // pred_region
          %288 = dma.done [#allocation6], 16
        $region48: #{progressive_down.1} parent=39 // pred_fallthru
          _
        %289 = sfence
        %p290 = scmp.lt.s32.totalorder %s30, 1
        %s291 = scalar_select %p290, %s30, 1
        %p292 = scmp.lt.s32.totalorder %s31, 0
        %s293 = scalar_select %p292, %s31, 0
        %s294 = smul.addr %s291, 4
        %s295 = sadd.s32 %s293, %s294
        %s296 = smul.addr %s295, 8
        %s297 = scalar_lea.vmem %s0, %s296
        %p298 = pneg %p61
        %p299 = pneg %p58
        %p300 = scmp.lt.s32.totalorder %s30, 1
        %s301 = scalar_select %p300, %s30, 1
        %p302 = scmp.lt.s32.totalorder %s31, 0
        %s303 = scalar_select %p302, %s31, 0
        %s304 = smul.addr %s301, 8
        %s305 = sadd.s32 %s303, %s304
        %s306 = smul.addr %s305, 8
        %s307 = scalar_lea.vmem %s1, %s306
        %p308 = pneg %p89
        %p309 = pneg %p86
        %p310 = pneg %p110
        %p311 = pneg %p107
        %p312 = pneg %p131
        %p313 = pneg %p128
        %p314 = pneg %p152
        %p315 = pneg %p149
        %p316 = pneg %p180
        %p317 = pneg %p177
        %s318 = sand.u32 %s167, 1
        %s319 = scalar_lea.sflag [#allocation3], %s318
        %s320 = sand.u32 %s167, 1
        %s321 = smul.addr %s320, 64
        %s322 = scalar_lea.vmem [#allocation7], %s321
        %p323 = pneg %p208
        %p324 = pneg %p205
        %s325 = sand.u32 %s195, 1
        %s326 = scalar_lea.sflag [#allocation9], %s325
        %s327 = sand.u32 %s195, 1
        %s328 = smul.addr %s327, 32
        %s329 = scalar_lea.vmem [#allocation8], %s328
        %p330 = scmp.lt.s32.totalorder %s30, 1
        %s331 = scalar_select %p330, %s30, 1
        %p332 = scmp.lt.s32.totalorder %s31, 0
        %s333 = scalar_select %p332, %s31, 0
        %s334 = smul.addr %s331, 4
        %s335 = sadd.s32 %s333, %s334
        %s336 = smul.addr %s335, 8
        %s337 = scalar_lea.vmem %s0, %s336
        %p338 = scmp.lt.s32.totalorder %s30, 1
        %s339 = scalar_select %p338, %s30, 1
        %p340 = scmp.lt.s32.totalorder %s31, 0
        %s341 = scalar_select %p340, %s31, 0
        %s342 = smul.addr %s339, 8
        %s343 = sadd.s32 %s341, %s342
        %s344 = smul.addr %s343, 8
        %s345 = scalar_lea.vmem %s1, %s344
        %v346 = vld [vmem:[%s337] sm:$0xff]
        %v347 = vld [vmem:[%s337 + $0x8] sm:$0xff]
        %v348 = vld [vmem:[%s337 + $0x10] sm:$0xff]
        %v349 = vld [vmem:[%s337 + $0x18] sm:$0xff]
        %354 = vrot.lane.b32.xlu0 %v346, 112
        %v355 = vpop.permute.xlu0 %354
        %356 = vrot.lane.b32.xlu0 %v347, 112
        %v357 = vpop.permute.xlu0 %356
        %358 = vrot.lane.b32.xlu0 %v348, 112
        %v359 = vpop.permute.xlu0 %358
        %360 = vrot.lane.b32.xlu0 %v349, 112
        %v361 = vpop.permute.xlu0 %360
        %v366 = vadd.f32 %v346, %v355
        %v367 = vadd.f32 %v347, %v357
        %v368 = vadd.f32 %v348, %v359
        %v369 = vadd.f32 %v349, %v361
        %v370 = vld [vmem:[%s2] sm:$0xff]
        %v371 = vld [vmem:[%s2 + $0x8] sm:$0xff]
        %vm372 = vcmask 130048
        %v374 = vsel %vm372, %v366, 0
        %v377 = vsel %vm372, %v367, 0
        %v380 = vsel %vm372, %v368, 0
        %v383 = vsel %vm372, %v369, 0
        %385 = vmatprep.subr.mxu0 0.0
        %386 = vmatpush1.msra.mxu0 0.0
        %387 = vmatprep.subr.mxu0 0.0
        %388 = vmatpush1.msra.mxu0 0.0
        %389 = vmatprep.subr.mxu0 0.0
        %390 = vmatpush1.msra.mxu0 0.0
        %391 = vmatprep.subr.mxu0 0.0
        %392 = vmatpush1.msra.mxu0 0.0
        %393 = vmatprep.subr.mxu0 0.0
        %394 = vmatpush1.msra.mxu0 0.0
        %395 = vmatprep.subr.mxu0 0.0
        %396 = vmatpush1.msra.mxu0 0.0
        %397 = vmatprep.subr.mxu0 0.0
        %398 = vmatpush1.msra.mxu0 0.0
        %399 = vmatprep.subr.mxu0 0.0
        %400 = vmatpush1.msra.mxu0 0.0
        %401 = vmatprep.subr.mxu0 0.0
        %402 = vmatpush1.msra.mxu0 0.0
        %403 = vmatprep.subr.mxu0 0.0
        %404 = vmatpush1.msra.mxu0 0.0
        %405 = vmatprep.subr.mxu0 0.0
        %406 = vmatpush1.msra.mxu0 0.0
        %407 = vmatprep.subr.mxu0 0.0
        %408 = vmatpush1.msra.mxu0 0.0
        %409 = vmatprep.subr.mxu0 0.0
        %410 = vmatpush1.msra.mxu0 0.0
        %411 = vmatprep.subr.mxu0 0.0
        %412 = vmatpush1.msra.mxu0 0.0
        %413 = vmatprep.subr.mxu0 0.0
        %414 = vmatpush1.msra.mxu0 %v371
        %415 = vmatprep.subr.mxu0 0.0
        %416 = vmatpush1.msra.mxu0 %v370
        %417 = vmatprep.subr.mxu0 0.0
        %418 = vmatpush2.msra.mxu0 0.0
        %419 = vmatprep.subr.mxu0 0.0
        %420 = vmatpush2.msra.mxu0 0.0
        %421 = vmatprep.subr.mxu0 0.0
        %422 = vmatpush2.msra.mxu0 0.0
        %423 = vmatprep.subr.mxu0 0.0
        %424 = vmatpush2.msra.mxu0 0.0
        %425 = vmatprep.subr.mxu0 0.0
        %426 = vmatpush2.msra.mxu0 0.0
        %427 = vmatprep.subr.mxu0 0.0
        %428 = vmatpush2.msra.mxu0 0.0
        %429 = vmatprep.subr.mxu0 0.0
        %430 = vmatpush2.msra.mxu0 0.0
        %431 = vmatprep.subr.mxu0 0.0
        %432 = vmatpush2.msra.mxu0 0.0
        %433 = vmatprep.subr.mxu0 0.0
        %434 = vmatpush2.msra.mxu0 0.0
        %435 = vmatprep.subr.mxu0 0.0
        %436 = vmatpush2.msra.mxu0 0.0
        %437 = vmatprep.subr.mxu0 0.0
        %438 = vmatpush2.msra.mxu0 0.0
        %439 = vmatprep.subr.mxu0 0.0
        %440 = vmatpush2.msra.mxu0 0.0
        %441 = vmatprep.subr.mxu0 0.0
        %442 = vmatpush2.msra.mxu0 0.0
        %443 = vmatprep.subr.mxu0 0.0
        %444 = vmatpush2.msra.mxu0 0.0
        %445 = vmatprep.subr.mxu0 0.0
        %446 = vmatpush2.msra.mxu0 0.0
        %447 = vmatprep.subr.mxu0 0.0
        %448 = vmatpush2.msra.mxu0 0.0
        %449 = vmatprep.mubr.f32.mxu0 0.0
        %450 = vmatmul.mubr.f32.gmra.mxu0 %v374
        %v451 = vpop.f32.mrf.mxu0
        %v452 = vadd.f32 0.0, %v451
        %v453 = vpop.f32.mrf.mxu0
        %454 = vmatprep.mubr.f32.mxu0 0.0
        %455 = vmatmul.mubr.f32.gmra.mxu0 %v377
        %v456 = vpop.f32.mrf.mxu0
        %v457 = vadd.f32 0.0, %v456
        %v458 = vpop.f32.mrf.mxu0
        %459 = vmatprep.mubr.f32.mxu0 0.0
        %460 = vmatmul.mubr.f32.gmra.mxu0 %v380
        %v461 = vpop.f32.mrf.mxu0
        %v462 = vadd.f32 0.0, %v461
        %v463 = vpop.f32.mrf.mxu0
        %464 = vmatprep.mubr.f32.mxu0 0.0
        %465 = vmatmul.mubr.f32.gmra.mxu0 %v383
        %v466 = vpop.f32.mrf.mxu0
        %v467 = vadd.f32 0.0, %v466
        %v468 = vpop.f32.mrf.mxu0
        %469 = vdwg.mxu0
        %vm470 = vcmask 64512
        %471 = vst.msk [vmem:[%s329] sm:$0xff] %vm470, %v452
        %472 = vst.msk [vmem:[%s329 + $0x8] sm:$0xff] %vm470, %v457
        %473 = vst.msk [vmem:[%s329 + $0x10] sm:$0xff] %vm470, %v462
        %474 = vst.msk [vmem:[%s329 + $0x18] sm:$0xff] %vm470, %v467
        %v475 = vld [vmem:[%s345] sm:$0xff]
        %s476 = sld [smem:[#allocation5]]
        %v477 = vstv %s476
        %v478 = vadd.f32 %v475, %v477
        %s479 = sld [smem:[#allocation2]]
        %v480 = vld [vmem:[%s329] sm:$0xff]
        %v481 = vstv %s479
        %v482 = vmul.f32 %v481, %v480
        %v483 = vadd.f32 %v478, %v482
        %s484 = sld [smem:[#allocation2 + $0x1]]
        %s485 = scalar_lea.vmem %s329, 8 [#allocation8]
        %v486 = vld [vmem:[%s485] sm:$0xff]
        %v487 = vstv %s484
        %v488 = vmul.f32 %v487, %v486
        %v489 = vadd.f32 %v483, %v488
        %s490 = sld [smem:[#allocation2 + $0x2]]
        %s491 = scalar_lea.vmem %s329, 16 [#allocation8]
        %v492 = vld [vmem:[%s491] sm:$0xff]
        %v493 = vstv %s490
        %v494 = vmul.f32 %v493, %v492
        %v495 = vadd.f32 %v489, %v494
        %s496 = sld [smem:[#allocation2 + $0x3]]
        %s497 = scalar_lea.vmem %s329, 24 [#allocation8]
        %v498 = vld [vmem:[%s497] sm:$0xff]
        %v499 = vstv %s496
        %v500 = vmul.f32 %v499, %v498
        %v501 = vadd.f32 %v495, %v500
        %502 = vst.msk [vmem:[%s322] sm:$0xff] %vm470, %v501
        %s503 = scalar_lea.vmem %s345, 8
        %v504 = vld [vmem:[%s503] sm:$0xff]
        %s505 = sld [smem:[#allocation5 + $0x1]]
        %v506 = vstv %s505
        %v507 = vadd.f32 %v504, %v506
        %s508 = sld [smem:[#allocation2 + $0x80]]
        %v509 = vld [vmem:[%s329] sm:$0xff]
        %v510 = vstv %s508
        %v511 = vmul.f32 %v510, %v509
        %v512 = vadd.f32 %v507, %v511
        %s513 = sld [smem:[#allocation2 + $0x81]]
        %v514 = vld [vmem:[%s485] sm:$0xff]
        %v515 = vstv %s513
        %v516 = vmul.f32 %v515, %v514
        %v517 = vadd.f32 %v512, %v516
        %s518 = sld [smem:[#allocation2 + $0x82]]
        %v519 = vld [vmem:[%s491] sm:$0xff]
        %v520 = vstv %s518
        %v521 = vmul.f32 %v520, %v519
        %v522 = vadd.f32 %v517, %v521
        %s523 = sld [smem:[#allocation2 + $0x83]]
        %v524 = vld [vmem:[%s497] sm:$0xff]
        %v525 = vstv %s523
        %v526 = vmul.f32 %v525, %v524
        %v527 = vadd.f32 %v522, %v526
        %s528 = scalar_lea.vmem %s322, 8 [#allocation7]
        %529 = vst.msk [vmem:[%s528] sm:$0xff] %vm470, %v527
        %s530 = scalar_lea.vmem %s345, 16
        %v531 = vld [vmem:[%s530] sm:$0xff]
        %s532 = sld [smem:[#allocation5 + $0x2]]
        %v533 = vstv %s532
        %v534 = vadd.f32 %v531, %v533
        %s535 = sld [smem:[#allocation2 + $0x100]]
        %v536 = vld [vmem:[%s329] sm:$0xff]
        %v537 = vstv %s535
        %v538 = vmul.f32 %v537, %v536
        %v539 = vadd.f32 %v534, %v538
        %s540 = sld [smem:[#allocation2 + $0x101]]
        %v541 = vld [vmem:[%s485] sm:$0xff]
        %v542 = vstv %s540
        %v543 = vmul.f32 %v542, %v541
        %v544 = vadd.f32 %v539, %v543
        %s545 = sld [smem:[#allocation2 + $0x102]]
        %v546 = vld [vmem:[%s491] sm:$0xff]
        %v547 = vstv %s545
        %v548 = vmul.f32 %v547, %v546
        %v549 = vadd.f32 %v544, %v548
        %s550 = sld [smem:[#allocation2 + $0x103]]
        %v551 = vld [vmem:[%s497] sm:$0xff]
        %v552 = vstv %s550
        %v553 = vmul.f32 %v552, %v551
        %v554 = vadd.f32 %v549, %v553
        %s555 = scalar_lea.vmem %s322, 16 [#allocation7]
        %556 = vst.msk [vmem:[%s555] sm:$0xff] %vm470, %v554
        %s557 = scalar_lea.vmem %s345, 24
        %v558 = vld [vmem:[%s557] sm:$0xff]
        %s559 = sld [smem:[#allocation5 + $0x3]]
        %v560 = vstv %s559
        %v561 = vadd.f32 %v558, %v560
        %s562 = sld [smem:[#allocation2 + $0x180]]
        %v563 = vld [vmem:[%s329] sm:$0xff]
        %v564 = vstv %s562
        %v565 = vmul.f32 %v564, %v563
        %v566 = vadd.f32 %v561, %v565
        %s567 = sld [smem:[#allocation2 + $0x181]]
        %v568 = vld [vmem:[%s485] sm:$0xff]
        %v569 = vstv %s567
        %v570 = vmul.f32 %v569, %v568
        %v571 = vadd.f32 %v566, %v570
        %s572 = sld [smem:[#allocation2 + $0x182]]
        %v573 = vld [vmem:[%s491] sm:$0xff]
        %v574 = vstv %s572
        %v575 = vmul.f32 %v574, %v573
        %v576 = vadd.f32 %v571, %v575
        %s577 = sld [smem:[#allocation2 + $0x183]]
        %v578 = vld [vmem:[%s497] sm:$0xff]
        %v579 = vstv %s577
        %v580 = vmul.f32 %v579, %v578
        %v581 = vadd.f32 %v576, %v580
        %s582 = scalar_lea.vmem %s322, 24 [#allocation7]
        %583 = vst.msk [vmem:[%s582] sm:$0xff] %vm470, %v581
        %s584 = scalar_lea.vmem %s345, 32
        %v585 = vld [vmem:[%s584] sm:$0xff]
        %s586 = sld [smem:[#allocation5 + $0x4]]
        %v587 = vstv %s586
        %v588 = vadd.f32 %v585, %v587
        %s589 = sld [smem:[#allocation2 + $0x200]]
        %v590 = vld [vmem:[%s329] sm:$0xff]
        %v591 = vstv %s589
        %v592 = vmul.f32 %v591, %v590
        %v593 = vadd.f32 %v588, %v592
        %s594 = sld [smem:[#allocation2 + $0x201]]
        %v595 = vld [vmem:[%s485] sm:$0xff]
        %v596 = vstv %s594
        %v597 = vmul.f32 %v596, %v595
        %v598 = vadd.f32 %v593, %v597
        %s599 = sld [smem:[#allocation2 + $0x202]]
        %v600 = vld [vmem:[%s491] sm:$0xff]
        %v601 = vstv %s599
        %v602 = vmul.f32 %v601, %v600
        %v603 = vadd.f32 %v598, %v602
        %s604 = sld [smem:[#allocation2 + $0x203]]
        %v605 = vld [vmem:[%s497] sm:$0xff]
        %v606 = vstv %s604
        %v607 = vmul.f32 %v606, %v605
        %v608 = vadd.f32 %v603, %v607
        %s609 = scalar_lea.vmem %s322, 32 [#allocation7]
        %610 = vst.msk [vmem:[%s609] sm:$0xff] %vm470, %v608
        %s611 = scalar_lea.vmem %s345, 40
        %v612 = vld [vmem:[%s611] sm:$0xff]
        %s613 = sld [smem:[#allocation5 + $0x5]]
        %v614 = vstv %s613
        %v615 = vadd.f32 %v612, %v614
        %s616 = sld [smem:[#allocation2 + $0x280]]
        %v617 = vld [vmem:[%s329] sm:$0xff]
        %v618 = vstv %s616
        %v619 = vmul.f32 %v618, %v617
        %v620 = vadd.f32 %v615, %v619
        %s621 = sld [smem:[#allocation2 + $0x281]]
        %v622 = vld [vmem:[%s485] sm:$0xff]
        %v623 = vstv %s621
        %v624 = vmul.f32 %v623, %v622
        %v625 = vadd.f32 %v620, %v624
        %s626 = sld [smem:[#allocation2 + $0x282]]
        %v627 = vld [vmem:[%s491] sm:$0xff]
        %v628 = vstv %s626
        %v629 = vmul.f32 %v628, %v627
        %v630 = vadd.f32 %v625, %v629
        %s631 = sld [smem:[#allocation2 + $0x283]]
        %v632 = vld [vmem:[%s497] sm:$0xff]
        %v633 = vstv %s631
        %v634 = vmul.f32 %v633, %v632
        %v635 = vadd.f32 %v630, %v634
        %s636 = scalar_lea.vmem %s322, 40 [#allocation7]
        %637 = vst.msk [vmem:[%s636] sm:$0xff] %vm470, %v635
        %s638 = scalar_lea.vmem %s345, 48
        %v639 = vld [vmem:[%s638] sm:$0xff]
        %s640 = sld [smem:[#allocation5 + $0x6]]
        %v641 = vstv %s640
        %v642 = vadd.f32 %v639, %v641
        %s643 = sld [smem:[#allocation2 + $0x300]]
        %v644 = vld [vmem:[%s329] sm:$0xff]
        %v645 = vstv %s643
        %v646 = vmul.f32 %v645, %v644
        %v647 = vadd.f32 %v642, %v646
        %s648 = sld [smem:[#allocation2 + $0x301]]
        %v649 = vld [vmem:[%s485] sm:$0xff]
        %v650 = vstv %s648
        %v651 = vmul.f32 %v650, %v649
        %v652 = vadd.f32 %v647, %v651
        %s653 = sld [smem:[#allocation2 + $0x302]]
        %v654 = vld [vmem:[%s491] sm:$0xff]
        %v655 = vstv %s653
        %v656 = vmul.f32 %v655, %v654
        %v657 = vadd.f32 %v652, %v656
        %s658 = sld [smem:[#allocation2 + $0x303]]
        %v659 = vld [vmem:[%s497] sm:$0xff]
        %v660 = vstv %s658
        %v661 = vmul.f32 %v660, %v659
        %v662 = vadd.f32 %v657, %v661
        %s663 = scalar_lea.vmem %s322, 48 [#allocation7]
        %664 = vst.msk [vmem:[%s663] sm:$0xff] %vm470, %v662
        %s665 = scalar_lea.vmem %s345, 56
        %v666 = vld [vmem:[%s665] sm:$0xff]
        %s667 = sld [smem:[#allocation5 + $0x7]]
        %v668 = vstv %s667
        %v669 = vadd.f32 %v666, %v668
        %s670 = sld [smem:[#allocation2 + $0x380]]
        %v671 = vld [vmem:[%s329] sm:$0xff]
        %v672 = vstv %s670
        %v673 = vmul.f32 %v672, %v671
        %v674 = vadd.f32 %v669, %v673
        %s675 = sld [smem:[#allocation2 + $0x381]]
        %v676 = vld [vmem:[%s485] sm:$0xff]
        %v677 = vstv %s675
        %v678 = vmul.f32 %v677, %v676
        %v679 = vadd.f32 %v674, %v678
        %s680 = sld [smem:[#allocation2 + $0x382]]
        %v681 = vld [vmem:[%s491] sm:$0xff]
        %v682 = vstv %s680
        %v683 = vmul.f32 %v682, %v681
        %v684 = vadd.f32 %v679, %v683
        %s685 = sld [smem:[#allocation2 + $0x383]]
        %v686 = vld [vmem:[%s497] sm:$0xff]
        %v687 = vstv %s685
        %v688 = vmul.f32 %v687, %v686
        %v689 = vadd.f32 %v684, %v688
        %s690 = scalar_lea.vmem %s322, 56 [#allocation7]
        %691 = vst.msk [vmem:[%s690] sm:$0xff] %vm470, %v689
        %s692 = sand.u32 %s167, 1
        %s693 = scalar_lea.sflag [#allocation3], %s692
        %s694 = sand.u32 %s167, 1
        %s695 = smul.addr %s694, 64
        %s696 = scalar_lea.vmem [#allocation7], %s695
        %s697 = sand.u32 %s195, 1
        %s698 = scalar_lea.sflag [#allocation9], %s697
        %s699 = sand.u32 %s195, 1
        %s700 = smul.addr %s699, 32
        %s701 = scalar_lea.vmem [#allocation8], %s700
        // Predicated region
        $region49: #{progressive_down.1} parent=39 // pred_check
          %p702 = pneg %p177
        $region50: #{progressive_down.1} parent=39 // pred_check_branch
          %704 = sbr.rel (%p702) target = $region52
        $region51: #{progressive_down.1} parent=39 // pred_region
          %s706 = ssub.s32 1024, 1024
          %707 = vsyncadd %s693, %s706
          %s708 = smul.addr %s30, 8
          %s709 = sadd.s32 %s31, %s708
          %s710 = smul.addr %s709, 128
          %s711 = scalar_lea.hbm %s5, %s710
          %s712 = sshll.u32 %s696, 4
          %s713 = int_to_ptr.vmem [resolvable:$true] %s712
          %718 = dma.vmem_to_hbm [thread:$0]  %s713, 1024, %s711, %s693, 128, 128, 8
        $region52: #{progressive_down.1} parent=39 // pred_fallthru
          _
        // Predicated region
        $region53: #{progressive_down.1} parent=39 // pred_check
          %p719 = pneg %p205
        $region54: #{progressive_down.1} parent=39 // pred_check_branch
          %721 = sbr.rel (%p719) target = $region56
        $region55: #{progressive_down.1} parent=39 // pred_region
          %s723 = ssub.s32 512, 512
          %724 = vsyncadd %s698, %s723
          %s725 = smul.addr %s30, 4
          %s726 = sadd.s32 %s31, %s725
          %s727 = smul.addr %s726, 128
          %s728 = scalar_lea.hbm %s6, %s727
          %s729 = sshll.u32 %s701, 4
          %s730 = int_to_ptr.vmem [resolvable:$true] %s729
          %735 = dma.vmem_to_hbm [thread:$0]  %s730, 512, %s728, %s698, 128, 128, 8
        $region56: #{progressive_down.1} parent=39 // pred_fallthru
          _
      $region40: #{progressive_down.1} parent=5 // pred_fallthru
        _
      %p736 = scmp.le.s32.totalorder 2, %s21
      // Predicated region
      $region57: #{progressive_down.1} parent=5 // pred_check
        %p737 = pneg %p736
      $region58: #{progressive_down.1} parent=5 // pred_check_branch
        %739 = sbr.rel (%p737) target = $region60
      $region59: #{progressive_down.1} parent=5 // pred_region
        %s740 = ssub.s32 %s21, 2
        // Predicated region
        $region61: #{progressive_down.1} parent=59 // pred_check
          %p741 = pneg %p183
        $region62: #{progressive_down.1} parent=59 // pred_check_branch
          %743 = sbr.rel (%p741) target = $region64
        $region63: #{progressive_down.1} parent=59 // pred_region
          %s744 = sand.u32 %s168, 1
          %s745 = scalar_lea.sflag [#allocation3], %s744
          %s746 = sand.u32 %s168, 1
          %s747 = smul.addr %s746, 64
          %s748 = scalar_lea.vmem [#allocation7], %s747
          %749 = dma.done %s745, 1024
        $region64: #{progressive_down.1} parent=59 // pred_fallthru
          _
        // Predicated region
        $region65: #{progressive_down.1} parent=59 // pred_check
          %p750 = pneg %p211
        $region66: #{progressive_down.1} parent=59 // pred_check_branch
          %752 = sbr.rel (%p750) target = $region68
        $region67: #{progressive_down.1} parent=59 // pred_region
          %s753 = sand.u32 %s196, 1
          %s754 = scalar_lea.sflag [#allocation9], %s753
          %s755 = sand.u32 %s196, 1
          %s756 = smul.addr %s755, 32
          %s757 = scalar_lea.vmem [#allocation8], %s756
          %758 = dma.done %s754, 512
        $region68: #{progressive_down.1} parent=59 // pred_fallthru
          _
      $region60: #{progressive_down.1} parent=5 // pred_fallthru
        _
    $region6: #{progressive_down.1} parent=1 // loop_footer
      %s25 = sadd.s32 1, %s21
    $region7: #{progressive_down.1} parent=1 // loop_footer_branch
      %20 = sbr.rel target = $region3
    $region8: #{progressive_down.1} parent=1 // loop_exit
      _
    %759 = vsyncpa [#allocation3], 1
    %s760 = scalar_lea.sflag [#allocation3], 1
    %761 = vsyncpa %s760, 1
    %762 = vsyncpa [#allocation9], 1
    %s763 = scalar_lea.sflag [#allocation9], 1
    %764 = vsyncpa %s763, 1
    %765 = vsyncpa [#allocation4], 1
    %s766 = scalar_lea.sflag [#allocation4], 1
    %767 = vsyncpa %s766, 1
    %768 = vsyncpa [#allocation6], 1

</llo_original>
